<compile_context>
chip_gen: v5e
topology: v5e:2x2
jax: 0.10.0
libtpu: 0.0.40
codegen_flags: <defaults>
</compile_context>

<pallas_src>
import functools

import jax
import jax.numpy as jnp
from jax import lax
from jax.experimental import pallas as pl
from jax.experimental.pallas import tpu as pltpu


# ----------------------------- Pallas kernels -----------------------------

def _matmul_affine_kernel(a_ref, b_ref, scale_ref, shift_ref, o_ref, *, relu):
    acc = jnp.dot(a_ref[...], b_ref[...], preferred_element_type=jnp.float32)
    y = acc * scale_ref[...] + shift_ref[...]
    if relu:
        y = jnp.maximum(y, 0.0)
    o_ref[...] = y.astype(o_ref.dtype)


def matmul_affine(a, b, scale, shift, relu, tm=512, out_dtype=jnp.bfloat16):
    """(a @ b) * scale + shift (+ optional ReLU).

    a:(M,K) bf16, b:(K,N) bf16 (resident), scale/shift:(1,N) f32, out bf16.
    Single full-K / full-N block, grid over M only.
    """
    M, K = a.shape
    Kb, N = b.shape
    assert K == Kb
    bm = M if M <= tm else tm
    grid_m = pl.cdiv(M, bm)
    return pl.pallas_call(
        functools.partial(_matmul_affine_kernel, relu=relu),
        out_shape=jax.ShapeDtypeStruct((M, N), out_dtype),
        grid_spec=pltpu.PrefetchScalarGridSpec(
            num_scalar_prefetch=0,
            grid=(grid_m,),
            in_specs=[
                pl.BlockSpec((bm, K), lambda i: (i, 0)),
                pl.BlockSpec((K, N), lambda i: (0, 0)),   # resident weights
                pl.BlockSpec((1, N), lambda i: (0, 0)),
                pl.BlockSpec((1, N), lambda i: (0, 0)),
            ],
            out_specs=pl.BlockSpec((bm, N), lambda i: (i, 0)),
        ),
        compiler_params=pltpu.CompilerParams(dimension_semantics=("parallel",)),
    )(a, b, scale, shift)


def _affine_kernel(x_ref, s_ref, b_ref, o_ref):
    o_ref[...] = (x_ref[...] * s_ref[...] + b_ref[...]).astype(o_ref.dtype)


def input_normalize(x_nchw, mean, std, range_norm, out_dtype=jnp.bfloat16):
    """Per-channel affine x*scale+shift (folded mean/std and range_norm)."""
    N, C, H, W = x_nchw.shape
    inv = 1.0 / std                                   # reciprocal once, on 3 values
    scale = 0.5 * inv if range_norm else inv
    shift = (0.5 - mean) * inv if range_norm else -mean * inv
    R, HW = N * C, H * W
    x2 = x_nchw.reshape(R, HW)
    s = jnp.tile(scale, (N,)).reshape(R, 1).astype(jnp.float32)
    b = jnp.tile(shift, (N,)).reshape(R, 1).astype(jnp.float32)
    bc = HW if HW <= 2048 else 2048                   # lane-dense column tiles
    out = pl.pallas_call(
        _affine_kernel,
        out_shape=jax.ShapeDtypeStruct((R, HW), out_dtype),
        grid_spec=pltpu.PrefetchScalarGridSpec(
            num_scalar_prefetch=0,
            grid=(pl.cdiv(HW, bc),),
            in_specs=[
                pl.BlockSpec((R, bc), lambda j: (0, j)),
                pl.BlockSpec((R, 1), lambda j: (0, 0)),
                pl.BlockSpec((R, 1), lambda j: (0, 0)),
            ],
            out_specs=pl.BlockSpec((R, bc), lambda j: (0, j)),
        ),
        compiler_params=pltpu.CompilerParams(dimension_semantics=("parallel",)),
    )(x2, s, b)
    return out.reshape(N, C, H, W)


def _add_relu_kernel(a_ref, b_ref, o_ref):
    y = a_ref[...].astype(jnp.float32) + b_ref[...].astype(jnp.float32)
    o_ref[...] = jnp.maximum(y, 0.0).astype(o_ref.dtype)


def add_relu(a, b, tm=1024):
    R, C = a.shape
    bm = R if R <= tm else tm
    return pl.pallas_call(
        _add_relu_kernel,
        out_shape=jax.ShapeDtypeStruct((R, C), a.dtype),
        grid_spec=pltpu.PrefetchScalarGridSpec(
            num_scalar_prefetch=0,
            grid=(pl.cdiv(R, bm),),
            in_specs=[pl.BlockSpec((bm, C), lambda i: (i, 0)),
                      pl.BlockSpec((bm, C), lambda i: (i, 0))],
            out_specs=pl.BlockSpec((bm, C), lambda i: (i, 0)),
        ),
        compiler_params=pltpu.CompilerParams(dimension_semantics=("parallel",)),
    )(a, b)


def _maxpool_kernel(*refs):
    """Elementwise max over the 9 (dy, dx) tap refs; all taps are (1,1,OW,C)."""
    o_ref = refs[-1]
    acc = refs[0][...]
    for r_ref in refs[1:-1]:
        acc = jnp.maximum(acc, r_ref[...])
    o_ref[...] = acc


def maxpool2d(x_nhwc, ksize=3, stride=2, pad=1):
    """3x3/s2 max pool, NHWC.

    Column (kx) shifts are materialized as XLA strided slices outside the
    kernel; row (ky) shifts come from shifted BlockSpec index_maps.  The kernel
    itself is a pure elementwise max over 9 lane-dense taps (no strided ref
    indexing -> safe for Mosaic and interpret mode alike).
    """
    N, H, W, C = x_nhwc.shape
    xp = jnp.pad(x_nhwc, ((0, 0), (pad, pad), (pad, pad), (0, 0)),
                 constant_values=-jnp.inf)
    Hp, Wp = H + 2 * pad, W + 2 * pad
    OH = (Hp - ksize) // stride + 1
    OW = (Wp - ksize) // stride + 1

    # Column-shifted views (N, Hp, OW, C); strided slicing done by XLA, not in-kernel.
    cols = [xp[:, :, dx:dx + stride * OW:stride, :] for dx in range(ksize)]

    def row_spec(dy):
        return pl.BlockSpec((1, 1, OW, C),
                            lambda n, oh, dy=dy: (n, stride * oh + dy, 0, 0))

    in_specs = [row_spec(dy) for _ in range(ksize) for dy in range(ksize)]
    args = [cols[dx] for dx in range(ksize) for _ in range(ksize)]

    out = pl.pallas_call(
        _maxpool_kernel,
        out_shape=jax.ShapeDtypeStruct((N, OH, OW, C), x_nhwc.dtype),
        grid_spec=pltpu.PrefetchScalarGridSpec(
            num_scalar_prefetch=0,
            grid=(N, OH),
            in_specs=in_specs,
            out_specs=pl.BlockSpec((1, 1, OW, C), lambda n, oh: (n, oh, 0, 0)),
        ),
        compiler_params=pltpu.CompilerParams(
            dimension_semantics=("parallel", "parallel")),
    )(*args)
    return out


# ----------------------------- conv glue -----------------------------

def im2col(x_nhwc, kh, kw, stride, pad):
    # TODO(synk): fuse im2col for the 3x3 conv into the matmul kernel (shifted
    # row BlockSpecs / manual DMA) to remove the remaining HBM expansion.
    N, H, W, C = x_nhwc.shape
    xp = jnp.pad(x_nhwc, ((0, 0), (pad, pad), (pad, pad), (0, 0))) if pad else x_nhwc
    OH = (H + 2 * pad - kh) // stride + 1
    OW = (W + 2 * pad - kw) // stride + 1
    cols = []
    for i in range(kh):
        for j in range(kw):
            cols.append(xp[:, i:i + stride * OH:stride, j:j + stride * OW:stride, :])
    col = jnp.stack(cols, axis=3)                       # (N, OH, OW, kh*kw, C)
    return col.reshape(N * OH * OW, kh * kw * C), OH, OW


def conv_bn_act(x_nhwc, cp, relu):
    """Conv + folded-BN affine + optional ReLU via one Pallas matmul."""
    N, H, W, C = x_nhwc.shape
    kh, kw, stride, pad = cp['kh'], cp['kw'], cp['stride'], cp['pad']
    x_bf = x_nhwc.astype(jnp.bfloat16)
    if kh == 1 and kw == 1 and pad == 0:
        if stride != 1:
            x_bf = x_bf[:, ::stride, ::stride, :]
        OH, OW = x_bf.shape[1], x_bf.shape[2]
        a = x_bf.reshape(N * OH * OW, C)                # 1x1 conv: no im2col
    else:
        a, OH, OW = im2col(x_bf, kh, kw, stride, pad)
    out = matmul_affine(a, cp['wmat'], cp['scale'], cp['shift'], relu)
    return out.reshape(N, OH, OW, cp['wmat'].shape[1])


def bottleneck(x_nhwc, p):
    identity = x_nhwc
    out = conv_bn_act(x_nhwc, p['conv1'], True)
    out = conv_bn_act(out, p['conv2'], True)
    out = conv_bn_act(out, p['conv3'], False)
    if 'downsample' in p:
        identity = conv_bn_act(x_nhwc, p['downsample'], False)
    N, H, W, C = out.shape
    y = add_relu(out.reshape(N * H * W, C), identity.reshape(N * H * W, C))
    return y.reshape(N, H, W, C)


# ----------------------------- model -----------------------------

LAYER_NAME_LIST = ('relu', 'maxpool', 'layer1')


def resnet_feature_extractor(x_nchw, params, layer_name_list=LAYER_NAME_LIST,
                             use_input_norm=True, range_norm=False):
    output = {}
    x = x_nchw.astype(jnp.float32)
    if use_input_norm or range_norm:
        mean = params['mean'] if use_input_norm else jnp.zeros((3,), jnp.float32)
        std = params['std'] if use_input_norm else jnp.ones((3,), jnp.float32)
        x = input_normalize(x, mean, std, range_norm)           # bf16 out
    else:
        x = x.astype(jnp.bfloat16)

    h = jnp.transpose(x, (0, 2, 3, 1))                          # NCHW -> NHWC

    # stem: conv1 (7x7,s2,p3) + bn1 + relu fused in the matmul epilogue
    h = conv_bn_act(h, params['conv1'], True)
    if 'relu' in layer_name_list:
        output['relu'] = jnp.transpose(h, (0, 3, 1, 2)).astype(jnp.float32)

    h = maxpool2d(h, ksize=3, stride=2, pad=1)
    if 'maxpool' in layer_name_list:
        output['maxpool'] = jnp.transpose(h, (0, 3, 1, 2)).astype(jnp.float32)

    for blk in params['layer1']:
        h = bottleneck(h, blk)
    if 'layer1' in layer_name_list:
        output['layer1'] = jnp.transpose(h, (0, 3, 1, 2)).astype(jnp.float32)

    # TODO(synk): layer2/layer3/layer4/avgpool/fc not reached with this layer_name_list.
    return output


# ----------------------------- deterministic params -----------------------------

def _make_conv(key, oc, ic, kh, kw):
    fan_in = ic * kh * kw
    return (jax.random.normal(key, (oc, ic, kh, kw), jnp.float32) /
            jnp.sqrt(fan_in)).astype(jnp.float32)


def _make_bn(key, c, eps=1e-5):
    k1, k2, k3, k4 = jax.random.split(key, 4)
    gamma = jax.random.uniform(k1, (c,), jnp.float32, 0.5, 1.5)
    beta = jax.random.normal(k2, (c,), jnp.float32) * 0.1
    rmean = jax.random.normal(k3, (c,), jnp.float32) * 0.1
    rvar = jax.random.uniform(k4, (c,), jnp.float32, 0.5, 1.5)
    s = gamma / jnp.sqrt(rvar + eps)
    b = beta - rmean * s
    return s, b


def init_raw_params(key):
    keys = iter(jax.random.split(key, 32))
    p = {}
    p['mean'] = jnp.array([0.485, 0.456, 0.406], jnp.float32)
    p['std'] = jnp.array([0.229, 0.224, 0.225], jnp.float32)
    p['conv1_w'] = _make_conv(next(keys), 64, 3, 7, 7)
    p['bn1_s'], p['bn1_b'] = _make_bn(next(keys), 64)
    blocks = []
    inplanes, planes, exp = 64, 64, 4
    for b in range(3):                                   # resnet101 layer1 = 3 Bottlenecks
        blk = {'stride': 1}
        blk['conv1_w'] = _make_conv(next(keys), planes, inplanes, 1, 1)
        blk['bn1_s'], blk['bn1_b'] = _make_bn(next(keys), planes)
        blk['conv2_w'] = _make_conv(next(keys), planes, planes, 3, 3)
        blk['bn2_s'], blk['bn2_b'] = _make_bn(next(keys), planes)
        blk['conv3_w'] = _make_conv(next(keys), planes * exp, planes, 1, 1)
        blk['bn3_s'], blk['bn3_b'] = _make_bn(next(keys), planes * exp)
        if b == 0:
            blk['ds_w'] = _make_conv(next(keys), planes * exp, inplanes, 1, 1)
            blk['ds_s'], blk['ds_b'] = _make_bn(next(keys), planes * exp)
        blocks.append(blk)
        inplanes = planes * exp
    p['layer1'] = blocks
    return p


def _prep_conv(w_oihw, s, b, stride, pad):
    """Precompute matmul-ready (K,OC) bf16 weights and (1,OC) f32 scale/shift."""
    OC, IC, KH, KW = w_oihw.shape
    wmat = jnp.transpose(w_oihw, (2, 3, 1, 0)).reshape(KH * KW * IC, OC)
    return {'wmat': wmat.astype(jnp.bfloat16),
            'scale': s.reshape(1, OC).astype(jnp.float32),
            'shift': b.reshape(1, OC).astype(jnp.float32),
            'kh': KH, 'kw': KW, 'stride': stride, 'pad': pad}


def prepare_params(raw):
    p = {'mean': raw['mean'], 'std': raw['std']}
    p['conv1'] = _prep_conv(raw['conv1_w'], raw['bn1_s'], raw['bn1_b'], 2, 3)
    blocks = []
    for b in raw['layer1']:
        blk = {
            'conv1': _prep_conv(b['conv1_w'], b['bn1_s'], b['bn1_b'], 1, 0),
            'conv2': _prep_conv(b['conv2_w'], b['bn2_s'], b['bn2_b'], b['stride'], 1),
            'conv3': _prep_conv(b['conv3_w'], b['bn3_s'], b['bn3_b'], 1, 0),
        }
        if 'ds_w' in b:
            blk['downsample'] = _prep_conv(b['ds_w'], b['ds_s'], b['ds_b'], b['stride'], 0)
        blocks.append(blk)
    p['layer1'] = blocks
    return p


# ----------------------------- pure-JAX reference (bf16-consistent) -----------------------------

def _ref_conv_bn(x, w, s, b, stride, pad, relu):
    y = lax.conv_general_dilated(
        x.astype(jnp.bfloat16),
        jnp.transpose(w, (2, 3, 1, 0)).astype(jnp.bfloat16),
        window_strides=(stride, stride), padding=((pad, pad), (pad, pad)),
        dimension_numbers=('NHWC', 'HWIO', 'NHWC'),
        preferred_element_type=jnp.float32)
    y = y * s + b
    if relu:
        y = jnp.maximum(y, 0.0)
    return y.astype(jnp.bfloat16)


def reference_forward(x_nchw, raw, use_input_norm=True, range_norm=False):
    x = x_nchw.astype(jnp.float32)
    if use_input_norm or range_norm:
        mean = raw['mean'] if use_input_norm else jnp.zeros((3,), jnp.float32)
        std = raw['std'] if use_input_norm else jnp.ones((3,), jnp.float32)
        inv = 1.0 / std
        scale = 0.5 * inv if range_norm else inv
        shift = (0.5 - mean) * inv if range_norm else -mean * inv
        x = (x * scale.reshape(1, 3, 1, 1) + shift.reshape(1, 3, 1, 1)).astype(jnp.bfloat16)
    else:
        x = x.astype(jnp.bfloat16)
    h = jnp.transpose(x, (0, 2, 3, 1))
    h = _ref_conv_bn(h, raw['conv1_w'], raw['bn1_s'], raw['bn1_b'], 2, 3, True)
    out = {'relu': jnp.transpose(h, (0, 3, 1, 2)).astype(jnp.float32)}
    hp = lax.reduce_window(h.astype(jnp.float32), -jnp.inf, lax.max,
                           (1, 3, 3, 1), (1, 2, 2, 1),
                           padding=((0, 0), (1, 1), (1, 1), (0, 0)))
    h = hp.astype(jnp.bfloat16)
    out['maxpool'] = jnp.transpose(h, (0, 3, 1, 2)).astype(jnp.float32)
    for p in raw['layer1']:
        idt = h
        y = _ref_conv_bn(h, p['conv1_w'], p['bn1_s'], p['bn1_b'], 1, 0, True)
        y = _ref_conv_bn(y, p['conv2_w'], p['bn2_s'], p['bn2_b'], p['stride'], 1, True)
        y = _ref_conv_bn(y, p['conv3_w'], p['bn3_s'], p['bn3_b'], 1, 0, False)
        if 'ds_w' in p:
            idt = _ref_conv_bn(h, p['ds_w'], p['ds_s'], p['ds_b'], p['stride'], 0, False)
        h = jnp.maximum(y.astype(jnp.float32) + idt.astype(jnp.float32),
                        0.0).astype(jnp.bfloat16)
    out['layer1'] = jnp.transpose(h, (0, 3, 1, 2)).astype(jnp.float32)
    return out


# ----------------------------- main -----------------------------

if __name__ == "__main__":
    key = jax.random.PRNGKey(0)
    x = jax.random.normal(key, (2, 3, 16, 16), jnp.float32)      # NCHW, like PyTorch
    raw_params = init_raw_params(jax.random.PRNGKey(42))
    prepared = prepare_params(raw_params)

    fwd = jax.jit(lambda inp: resnet_feature_extractor(inp, prepared))
    out = fwd(x)
    out = jax.tree_util.tree_map(jax.block_until_ready, out)

    ref = reference_forward(x, raw_params)
    for k in LAYER_NAME_LIST:
        assert out[k].shape == ref[k].shape, (k, out[k].shape, ref[k].shape)
        o = out[k].astype(jnp.float32)
        r = ref[k].astype(jnp.float32)
        err = float(jnp.max(jnp.abs(o - r)))
        tol = 2e-2 * float(jnp.max(jnp.abs(r))) + 1e-2
        assert err < tol, f"{k}: max abs err {err} (tol {tol})"

    print("KERNEL_OK")
</pallas_src>

<mosaic_0001>
module attributes {stable_mosaic.version = 11 : i64} {
  func.func @_affine_kernel(%arg0: i32, %arg1: memref<6x256xf32, #tpu.memory_space<vmem>>, %arg2: memref<6x1xf32, #tpu.memory_space<vmem>>, %arg3: memref<6x1xf32, #tpu.memory_space<vmem>>, %arg4: memref<6x256xbf16, #tpu.memory_space<vmem>>) attributes {dimension_semantics = [#tpu.dimension_semantics<parallel>], iteration_bounds = array<i64: 1>, scalar_prefetch = 0 : i64, scratch_operands = 0 : i64, tpu.core_type = #tpu.core_type<tc>, window_params = [{transform_indices = @transform_0, window_bounds = array<i64: 6, 256>}, {pipeline_mode = #tpu.pipeline_mode<synchronous>, transform_indices = @transform_1, window_bounds = array<i64: 6, 1>}, {pipeline_mode = #tpu.pipeline_mode<synchronous>, transform_indices = @transform_2, window_bounds = array<i64: 6, 1>}, {transform_indices = @transform_3, window_bounds = array<i64: 6, 256>}]} {
    %c0 = arith.constant 0 : index
    %c0_0 = arith.constant 0 : index
    %0 = vector.load %arg1[%c0, %c0_0] : memref<6x256xf32, #tpu.memory_space<vmem>>, vector<6x256xf32>
    %c0_1 = arith.constant 0 : index
    %c0_2 = arith.constant 0 : index
    %1 = vector.load %arg2[%c0_1, %c0_2] : memref<6x1xf32, #tpu.memory_space<vmem>>, vector<6x1xf32>
    %2 = vector.broadcast %1 : vector<6x1xf32> to vector<6x256xf32>
    %3 = arith.mulf %0, %2 : vector<6x256xf32>
    %c0_3 = arith.constant 0 : index
    %c0_4 = arith.constant 0 : index
    %4 = vector.load %arg3[%c0_3, %c0_4] : memref<6x1xf32, #tpu.memory_space<vmem>>, vector<6x1xf32>
    %5 = vector.broadcast %4 : vector<6x1xf32> to vector<6x256xf32>
    %6 = arith.addf %3, %5 : vector<6x256xf32>
    %7 = arith.truncf %6 : vector<6x256xf32> to vector<6x256xbf16>
    %c0_5 = arith.constant 0 : index
    %c0_6 = arith.constant 0 : index
    %8 = vector.load %arg4[%c0_5, %c0_6] : memref<6x256xbf16, #tpu.memory_space<vmem>>, vector<6x256xbf16>
    tpu.vector_store %arg4[%c0_5, %c0_6], %7 {strides = array<i32>} : memref<6x256xbf16, #tpu.memory_space<vmem>>, vector<6x256xbf16>,
    return
  }
  func.func @transform_0(%arg0: i32) -> (i32, i32) {
    %c0_i32 = arith.constant 0 : i32
    %c0_i32_0 = arith.constant 0 : i32
    return %c0_i32, %arg0 : i32, i32
  }
  func.func @transform_1(%arg0: i32) -> (i32, i32) {
    %c0_i32 = arith.constant 0 : i32
    %c0_i32_0 = arith.constant 0 : i32
    %c0_i32_1 = arith.constant 0 : i32
    return %c0_i32, %c0_i32_0 : i32, i32
  }
  func.func @transform_2(%arg0: i32) -> (i32, i32) {
    %c0_i32 = arith.constant 0 : i32
    %c0_i32_0 = arith.constant 0 : i32
    %c0_i32_1 = arith.constant 0 : i32
    return %c0_i32, %c0_i32_0 : i32, i32
  }
  func.func @transform_3(%arg0: i32) -> (i32, i32) {
    %c0_i32 = arith.constant 0 : i32
    %c0_i32_0 = arith.constant 0 : i32
    return %c0_i32, %arg0 : i32, i32
  }
}

module attributes {stable_mosaic.version = 11 : i64} {
  func.func @_matmul_affine_kernel(%arg0: i32, %arg1: memref<128x147xbf16, #tpu.memory_space<vmem>>, %arg2: memref<147x64xbf16, #tpu.memory_space<vmem>>, %arg3: memref<1x64xf32, #tpu.memory_space<vmem>>, %arg4: memref<1x64xf32, #tpu.memory_space<vmem>>, %arg5: memref<128x64xbf16, #tpu.memory_space<vmem>>) attributes {dimension_semantics = [#tpu.dimension_semantics<parallel>], iteration_bounds = array<i64: 1>, scalar_prefetch = 0 : i64, scratch_operands = 0 : i64, tpu.core_type = #tpu.core_type<tc>, window_params = [{transform_indices = @transform_0, window_bounds = array<i64: 128, 147>}, {pipeline_mode = #tpu.pipeline_mode<synchronous>, transform_indices = @transform_1, window_bounds = array<i64: 147, 64>}, {pipeline_mode = #tpu.pipeline_mode<synchronous>, transform_indices = @transform_2, window_bounds = array<i64: 1, 64>}, {pipeline_mode = #tpu.pipeline_mode<synchronous>, transform_indices = @transform_3, window_bounds = array<i64: 1, 64>}, {transform_indices = @transform_4, window_bounds = array<i64: 128, 64>}]} {
    %c0 = arith.constant 0 : index
    %c0_0 = arith.constant 0 : index
    %0 = vector.load %arg1[%c0, %c0_0] : memref<128x147xbf16, #tpu.memory_space<vmem>>, vector<128x147xbf16>
    %c0_1 = arith.constant 0 : index
    %c0_2 = arith.constant 0 : index
    %1 = vector.load %arg2[%c0_1, %c0_2] : memref<147x64xbf16, #tpu.memory_space<vmem>>, vector<147x64xbf16>
    %cst = arith.constant dense<0.000000e+00> : vector<128x64xf32>
    %2 = tpu.matmul %0, %1, %cst {dimension_numbers = #tpu.dot_dimension_numbers<[1], [0], [0], [1], [0, 0, 1, 1], [], []>} : vector<128x147xbf16>, vector<147x64xbf16>, vector<128x64xf32> -> vector<128x64xf32>
    %c0_3 = arith.constant 0 : index
    %c0_4 = arith.constant 0 : index
    %3 = vector.load %arg3[%c0_3, %c0_4] : memref<1x64xf32, #tpu.memory_space<vmem>>, vector<1x64xf32>
    %4 = vector.broadcast %3 : vector<1x64xf32> to vector<128x64xf32>
    %5 = arith.mulf %2, %4 : vector<128x64xf32>
    %c0_5 = arith.constant 0 : index
    %c0_6 = arith.constant 0 : index
    %6 = vector.load %arg4[%c0_5, %c0_6] : memref<1x64xf32, #tpu.memory_space<vmem>>, vector<1x64xf32>
    %7 = vector.broadcast %6 : vector<1x64xf32> to vector<128x64xf32>
    %8 = arith.addf %5, %7 : vector<128x64xf32>
    %cst_7 = arith.constant 0.000000e+00 : f32
    %9 = vector.broadcast %cst_7 : f32 to vector<128x64xf32>
    %10 = arith.maximumf %8, %9 : vector<128x64xf32>
    %11 = arith.truncf %10 : vector<128x64xf32> to vector<128x64xbf16>
    %c0_8 = arith.constant 0 : index
    %c0_9 = arith.constant 0 : index
    %12 = vector.load %arg5[%c0_8, %c0_9] : memref<128x64xbf16, #tpu.memory_space<vmem>>, vector<128x64xbf16>
    tpu.vector_store %arg5[%c0_8, %c0_9], %11 {strides = array<i32>} : memref<128x64xbf16, #tpu.memory_space<vmem>>, vector<128x64xbf16>,
    return
  }
  func.func @transform_0(%arg0: i32) -> (i32, i32) {
    %c0_i32 = arith.constant 0 : i32
    %c0_i32_0 = arith.constant 0 : i32
    return %arg0, %c0_i32 : i32, i32
  }
  func.func @transform_1(%arg0: i32) -> (i32, i32) {
    %c0_i32 = arith.constant 0 : i32
    %c0_i32_0 = arith.constant 0 : i32
    %c0_i32_1 = arith.constant 0 : i32
    return %c0_i32, %c0_i32_0 : i32, i32
  }
  func.func @transform_2(%arg0: i32) -> (i32, i32) {
    %c0_i32 = arith.constant 0 : i32
    %c0_i32_0 = arith.constant 0 : i32
    %c0_i32_1 = arith.constant 0 : i32
    return %c0_i32, %c0_i32_0 : i32, i32
  }
  func.func @transform_3(%arg0: i32) -> (i32, i32) {
    %c0_i32 = arith.constant 0 : i32
    %c0_i32_0 = arith.constant 0 : i32
    %c0_i32_1 = arith.constant 0 : i32
    return %c0_i32, %c0_i32_0 : i32, i32
  }
  func.func @transform_4(%arg0: i32) -> (i32, i32) {
    %c0_i32 = arith.constant 0 : i32
    %c0_i32_0 = arith.constant 0 : i32
    return %arg0, %c0_i32 : i32, i32
  }
}

module attributes {stable_mosaic.version = 11 : i64} {
  func.func @_maxpool_kernel(%arg0: i32, %arg1: i32, %arg2: memref<1x1x4x64xbf16, #tpu.memory_space<vmem>>, %arg3: memref<1x1x4x64xbf16, #tpu.memory_space<vmem>>, %arg4: memref<1x1x4x64xbf16, #tpu.memory_space<vmem>>, %arg5: memref<1x1x4x64xbf16, #tpu.memory_space<vmem>>, %arg6: memref<1x1x4x64xbf16, #tpu.memory_space<vmem>>, %arg7: memref<1x1x4x64xbf16, #tpu.memory_space<vmem>>, %arg8: memref<1x1x4x64xbf16, #tpu.memory_space<vmem>>, %arg9: memref<1x1x4x64xbf16, #tpu.memory_space<vmem>>, %arg10: memref<1x1x4x64xbf16, #tpu.memory_space<vmem>>, %arg11: memref<1x1x4x64xbf16, #tpu.memory_space<vmem>>) attributes {dimension_semantics = [#tpu.dimension_semantics<parallel>, #tpu.dimension_semantics<parallel>], iteration_bounds = array<i64: 2, 4>, scalar_prefetch = 0 : i64, scratch_operands = 0 : i64, tpu.core_type = #tpu.core_type<tc>, window_params = [{transform_indices = @transform_0, window_bounds = array<i64: 1, 1, 4, 64>}, {transform_indices = @transform_1, window_bounds = array<i64: 1, 1, 4, 64>}, {transform_indices = @transform_2, window_bounds = array<i64: 1, 1, 4, 64>}, {transform_indices = @transform_3, window_bounds = array<i64: 1, 1, 4, 64>}, {transform_indices = @transform_4, window_bounds = array<i64: 1, 1, 4, 64>}, {transform_indices = @transform_5, window_bounds = array<i64: 1, 1, 4, 64>}, {transform_indices = @transform_6, window_bounds = array<i64: 1, 1, 4, 64>}, {transform_indices = @transform_7, window_bounds = array<i64: 1, 1, 4, 64>}, {transform_indices = @transform_8, window_bounds = array<i64: 1, 1, 4, 64>}, {transform_indices = @transform_9, window_bounds = array<i64: 1, 1, 4, 64>}]} {
    %c0 = arith.constant 0 : index
    %c0_0 = arith.constant 0 : index
    %c0_1 = arith.constant 0 : index
    %c0_2 = arith.constant 0 : index
    %0 = vector.load %arg2[%c0, %c0_0, %c0_1, %c0_2] : memref<1x1x4x64xbf16, #tpu.memory_space<vmem>>, vector<1x1x4x64xbf16>
    %c0_3 = arith.constant 0 : index
    %c0_4 = arith.constant 0 : index
    %c0_5 = arith.constant 0 : index
    %c0_6 = arith.constant 0 : index
    %1 = vector.load %arg3[%c0_3, %c0_4, %c0_5, %c0_6] : memref<1x1x4x64xbf16, #tpu.memory_space<vmem>>, vector<1x1x4x64xbf16>
    %2 = arith.maximumf %0, %1 : vector<1x1x4x64xbf16>
    %c0_7 = arith.constant 0 : index
    %c0_8 = arith.constant 0 : index
    %c0_9 = arith.constant 0 : index
    %c0_10 = arith.constant 0 : index
    %3 = vector.load %arg4[%c0_7, %c0_8, %c0_9, %c0_10] : memref<1x1x4x64xbf16, #tpu.memory_space<vmem>>, vector<1x1x4x64xbf16>
    %4 = arith.maximumf %2, %3 : vector<1x1x4x64xbf16>
    %c0_11 = arith.constant 0 : index
    %c0_12 = arith.constant 0 : index
    %c0_13 = arith.constant 0 : index
    %c0_14 = arith.constant 0 : index
    %5 = vector.load %arg5[%c0_11, %c0_12, %c0_13, %c0_14] : memref<1x1x4x64xbf16, #tpu.memory_space<vmem>>, vector<1x1x4x64xbf16>
    %6 = arith.maximumf %4, %5 : vector<1x1x4x64xbf16>
    %c0_15 = arith.constant 0 : index
    %c0_16 = arith.constant 0 : index
    %c0_17 = arith.constant 0 : index
    %c0_18 = arith.constant 0 : index
    %7 = vector.load %arg6[%c0_15, %c0_16, %c0_17, %c0_18] : memref<1x1x4x64xbf16, #tpu.memory_space<vmem>>, vector<1x1x4x64xbf16>
    %8 = arith.maximumf %6, %7 : vector<1x1x4x64xbf16>
    %c0_19 = arith.constant 0 : index
    %c0_20 = arith.constant 0 : index
    %c0_21 = arith.constant 0 : index
    %c0_22 = arith.constant 0 : index
    %9 = vector.load %arg7[%c0_19, %c0_20, %c0_21, %c0_22] : memref<1x1x4x64xbf16, #tpu.memory_space<vmem>>, vector<1x1x4x64xbf16>
    %10 = arith.maximumf %8, %9 : vector<1x1x4x64xbf16>
    %c0_23 = arith.constant 0 : index
    %c0_24 = arith.constant 0 : index
    %c0_25 = arith.constant 0 : index
    %c0_26 = arith.constant 0 : index
    %11 = vector.load %arg8[%c0_23, %c0_24, %c0_25, %c0_26] : memref<1x1x4x64xbf16, #tpu.memory_space<vmem>>, vector<1x1x4x64xbf16>
    %12 = arith.maximumf %10, %11 : vector<1x1x4x64xbf16>
    %c0_27 = arith.constant 0 : index
    %c0_28 = arith.constant 0 : index
    %c0_29 = arith.constant 0 : index
    %c0_30 = arith.constant 0 : index
    %13 = vector.load %arg9[%c0_27, %c0_28, %c0_29, %c0_30] : memref<1x1x4x64xbf16, #tpu.memory_space<vmem>>, vector<1x1x4x64xbf16>
    %14 = arith.maximumf %12, %13 : vector<1x1x4x64xbf16>
    %c0_31 = arith.constant 0 : index
    %c0_32 = arith.constant 0 : index
    %c0_33 = arith.constant 0 : index
    %c0_34 = arith.constant 0 : index
    %15 = vector.load %arg10[%c0_31, %c0_32, %c0_33, %c0_34] : memref<1x1x4x64xbf16, #tpu.memory_space<vmem>>, vector<1x1x4x64xbf16>
    %16 = arith.maximumf %14, %15 : vector<1x1x4x64xbf16>
    %c0_35 = arith.constant 0 : index
    %c0_36 = arith.constant 0 : index
    %c0_37 = arith.constant 0 : index
    %c0_38 = arith.constant 0 : index
    %17 = vector.load %arg11[%c0_35, %c0_36, %c0_37, %c0_38] : memref<1x1x4x64xbf16, #tpu.memory_space<vmem>>, vector<1x1x4x64xbf16>
    tpu.vector_store %arg11[%c0_35, %c0_36, %c0_37, %c0_38], %16 {strides = array<i32>} : memref<1x1x4x64xbf16, #tpu.memory_space<vmem>>, vector<1x1x4x64xbf16>,
    return
  }
  func.func @transform_0(%arg0: i32, %arg1: i32) -> (i32, i32, i32, i32) {
    %c2_i32 = arith.constant 2 : i32
    %0 = arith.muli %c2_i32, %arg1 : i32
    %c0_i32 = arith.constant 0 : i32
    %1 = arith.addi %0, %c0_i32 : i32
    %c0_i32_0 = arith.constant 0 : i32
    %c0_i32_1 = arith.constant 0 : i32
    %c0_i32_2 = arith.constant 0 : i32
    return %arg0, %1, %c0_i32_0, %c0_i32_1 : i32, i32, i32, i32
  }
  func.func @transform_1(%arg0: i32, %arg1: i32) -> (i32, i32, i32, i32) {
    %c2_i32 = arith.constant 2 : i32
    %0 = arith.muli %c2_i32, %arg1 : i32
    %c1_i32 = arith.constant 1 : i32
    %1 = arith.addi %0, %c1_i32 : i32
    %c0_i32 = arith.constant 0 : i32
    %c0_i32_0 = arith.constant 0 : i32
    %c0_i32_1 = arith.constant 0 : i32
    return %arg0, %1, %c0_i32, %c0_i32_0 : i32, i32, i32, i32
  }
  func.func @transform_2(%arg0: i32, %arg1: i32) -> (i32, i32, i32, i32) {
    %c2_i32 = arith.constant 2 : i32
    %0 = arith.muli %c2_i32, %arg1 : i32
    %c2_i32_0 = arith.constant 2 : i32
    %1 = arith.addi %0, %c2_i32_0 : i32
    %c0_i32 = arith.constant 0 : i32
    %c0_i32_1 = arith.constant 0 : i32
    %c0_i32_2 = arith.constant 0 : i32
    return %arg0, %1, %c0_i32, %c0_i32_1 : i32, i32, i32, i32
  }
  func.func @transform_3(%arg0: i32, %arg1: i32) -> (i32, i32, i32, i32) {
    %c2_i32 = arith.constant 2 : i32
    %0 = arith.muli %c2_i32, %arg1 : i32
    %c0_i32 = arith.constant 0 : i32
    %1 = arith.addi %0, %c0_i32 : i32
    %c0_i32_0 = arith.constant 0 : i32
    %c0_i32_1 = arith.constant 0 : i32
    %c0_i32_2 = arith.constant 0 : i32
    return %arg0, %1, %c0_i32_0, %c0_i32_1 : i32, i32, i32, i32
  }
  func.func @transform_4(%arg0: i32, %arg1: i32) -> (i32, i32, i32, i32) {
    %c2_i32 = arith.constant 2 : i32
    %0 = arith.muli %c2_i32, %arg1 : i32
    %c1_i32 = arith.constant 1 : i32
    %1 = arith.addi %0, %c1_i32 : i32
    %c0_i32 = arith.constant 0 : i32
    %c0_i32_0 = arith.constant 0 : i32
    %c0_i32_1 = arith.constant 0 : i32
    return %arg0, %1, %c0_i32, %c0_i32_0 : i32, i32, i32, i32
  }
  func.func @transform_5(%arg0: i32, %arg1: i32) -> (i32, i32, i32, i32) {
    %c2_i32 = arith.constant 2 : i32
    %0 = arith.muli %c2_i32, %arg1 : i32
    %c2_i32_0 = arith.constant 2 : i32
    %1 = arith.addi %0, %c2_i32_0 : i32
    %c0_i32 = arith.constant 0 : i32
    %c0_i32_1 = arith.constant 0 : i32
    %c0_i32_2 = arith.constant 0 : i32
    return %arg0, %1, %c0_i32, %c0_i32_1 : i32, i32, i32, i32
  }
  func.func @transform_6(%arg0: i32, %arg1: i32) -> (i32, i32, i32, i32) {
    %c2_i32 = arith.constant 2 : i32
    %0 = arith.muli %c2_i32, %arg1 : i32
    %c0_i32 = arith.constant 0 : i32
    %1 = arith.addi %0, %c0_i32 : i32
    %c0_i32_0 = arith.constant 0 : i32
    %c0_i32_1 = arith.constant 0 : i32
    %c0_i32_2 = arith.constant 0 : i32
    return %arg0, %1, %c0_i32_0, %c0_i32_1 : i32, i32, i32, i32
  }
  func.func @transform_7(%arg0: i32, %arg1: i32) -> (i32, i32, i32, i32) {
    %c2_i32 = arith.constant 2 : i32
    %0 = arith.muli %c2_i32, %arg1 : i32
    %c1_i32 = arith.constant 1 : i32
    %1 = arith.addi %0, %c1_i32 : i32
    %c0_i32 = arith.constant 0 : i32
    %c0_i32_0 = arith.constant 0 : i32
    %c0_i32_1 = arith.constant 0 : i32
    return %arg0, %1, %c0_i32, %c0_i32_0 : i32, i32, i32, i32
  }
  func.func @transform_8(%arg0: i32, %arg1: i32) -> (i32, i32, i32, i32) {
    %c2_i32 = arith.constant 2 : i32
    %0 = arith.muli %c2_i32, %arg1 : i32
    %c2_i32_0 = arith.constant 2 : i32
    %1 = arith.addi %0, %c2_i32_0 : i32
    %c0_i32 = arith.constant 0 : i32
    %c0_i32_1 = arith.constant 0 : i32
    %c0_i32_2 = arith.constant 0 : i32
    return %arg0, %1, %c0_i32, %c0_i32_1 : i32, i32, i32, i32
  }
  func.func @transform_9(%arg0: i32, %arg1: i32) -> (i32, i32, i32, i32) {
    %c0_i32 = arith.constant 0 : i32
    %c0_i32_0 = arith.constant 0 : i32
    %c0_i32_1 = arith.constant 0 : i32
    return %arg0, %arg1, %c0_i32, %c0_i32_0 : i32, i32, i32, i32
  }
}

module attributes {stable_mosaic.version = 11 : i64} {
  func.func @_matmul_affine_kernel(%arg0: i32, %arg1: memref<32x64xbf16, #tpu.memory_space<vmem>>, %arg2: memref<64x64xbf16, #tpu.memory_space<vmem>>, %arg3: memref<1x64xf32, #tpu.memory_space<vmem>>, %arg4: memref<1x64xf32, #tpu.memory_space<vmem>>, %arg5: memref<32x64xbf16, #tpu.memory_space<vmem>>) attributes {dimension_semantics = [#tpu.dimension_semantics<parallel>], iteration_bounds = array<i64: 1>, scalar_prefetch = 0 : i64, scratch_operands = 0 : i64, tpu.core_type = #tpu.core_type<tc>, window_params = [{transform_indices = @transform_0, window_bounds = array<i64: 32, 64>}, {pipeline_mode = #tpu.pipeline_mode<synchronous>, transform_indices = @transform_1, window_bounds = array<i64: 64, 64>}, {pipeline_mode = #tpu.pipeline_mode<synchronous>, transform_indices = @transform_2, window_bounds = array<i64: 1, 64>}, {pipeline_mode = #tpu.pipeline_mode<synchronous>, transform_indices = @transform_3, window_bounds = array<i64: 1, 64>}, {transform_indices = @transform_4, window_bounds = array<i64: 32, 64>}]} {
    %c0 = arith.constant 0 : index
    %c0_0 = arith.constant 0 : index
    %0 = vector.load %arg1[%c0, %c0_0] : memref<32x64xbf16, #tpu.memory_space<vmem>>, vector<32x64xbf16>
    %c0_1 = arith.constant 0 : index
    %c0_2 = arith.constant 0 : index
    %1 = vector.load %arg2[%c0_1, %c0_2] : memref<64x64xbf16, #tpu.memory_space<vmem>>, vector<64x64xbf16>
    %cst = arith.constant dense<0.000000e+00> : vector<32x64xf32>
    %2 = tpu.matmul %0, %1, %cst {dimension_numbers = #tpu.dot_dimension_numbers<[1], [0], [0], [1], [0, 0, 1, 1], [], []>} : vector<32x64xbf16>, vector<64x64xbf16>, vector<32x64xf32> -> vector<32x64xf32>
    %c0_3 = arith.constant 0 : index
    %c0_4 = arith.constant 0 : index
    %3 = vector.load %arg3[%c0_3, %c0_4] : memref<1x64xf32, #tpu.memory_space<vmem>>, vector<1x64xf32>
    %4 = vector.broadcast %3 : vector<1x64xf32> to vector<32x64xf32>
    %5 = arith.mulf %2, %4 : vector<32x64xf32>
    %c0_5 = arith.constant 0 : index
    %c0_6 = arith.constant 0 : index
    %6 = vector.load %arg4[%c0_5, %c0_6] : memref<1x64xf32, #tpu.memory_space<vmem>>, vector<1x64xf32>
    %7 = vector.broadcast %6 : vector<1x64xf32> to vector<32x64xf32>
    %8 = arith.addf %5, %7 : vector<32x64xf32>
    %cst_7 = arith.constant 0.000000e+00 : f32
    %9 = vector.broadcast %cst_7 : f32 to vector<32x64xf32>
    %10 = arith.maximumf %8, %9 : vector<32x64xf32>
    %11 = arith.truncf %10 : vector<32x64xf32> to vector<32x64xbf16>
    %c0_8 = arith.constant 0 : index
    %c0_9 = arith.constant 0 : index
    %12 = vector.load %arg5[%c0_8, %c0_9] : memref<32x64xbf16, #tpu.memory_space<vmem>>, vector<32x64xbf16>
    tpu.vector_store %arg5[%c0_8, %c0_9], %11 {strides = array<i32>} : memref<32x64xbf16, #tpu.memory_space<vmem>>, vector<32x64xbf16>,
    return
  }
  func.func @transform_0(%arg0: i32) -> (i32, i32) {
    %c0_i32 = arith.constant 0 : i32
    %c0_i32_0 = arith.constant 0 : i32
    return %arg0, %c0_i32 : i32, i32
  }
  func.func @transform_1(%arg0: i32) -> (i32, i32) {
    %c0_i32 = arith.constant 0 : i32
    %c0_i32_0 = arith.constant 0 : i32
    %c0_i32_1 = arith.constant 0 : i32
    return %c0_i32, %c0_i32_0 : i32, i32
  }
  func.func @transform_2(%arg0: i32) -> (i32, i32) {
    %c0_i32 = arith.constant 0 : i32
    %c0_i32_0 = arith.constant 0 : i32
    %c0_i32_1 = arith.constant 0 : i32
    return %c0_i32, %c0_i32_0 : i32, i32
  }
  func.func @transform_3(%arg0: i32) -> (i32, i32) {
    %c0_i32 = arith.constant 0 : i32
    %c0_i32_0 = arith.constant 0 : i32
    %c0_i32_1 = arith.constant 0 : i32
    return %c0_i32, %c0_i32_0 : i32, i32
  }
  func.func @transform_4(%arg0: i32) -> (i32, i32) {
    %c0_i32 = arith.constant 0 : i32
    %c0_i32_0 = arith.constant 0 : i32
    return %arg0, %c0_i32 : i32, i32
  }
}

module attributes {stable_mosaic.version = 11 : i64} {
  func.func @_matmul_affine_kernel(%arg0: i32, %arg1: memref<32x576xbf16, #tpu.memory_space<vmem>>, %arg2: memref<576x64xbf16, #tpu.memory_space<vmem>>, %arg3: memref<1x64xf32, #tpu.memory_space<vmem>>, %arg4: memref<1x64xf32, #tpu.memory_space<vmem>>, %arg5: memref<32x64xbf16, #tpu.memory_space<vmem>>) attributes {dimension_semantics = [#tpu.dimension_semantics<parallel>], iteration_bounds = array<i64: 1>, scalar_prefetch = 0 : i64, scratch_operands = 0 : i64, tpu.core_type = #tpu.core_type<tc>, window_params = [{transform_indices = @transform_0, window_bounds = array<i64: 32, 576>}, {pipeline_mode = #tpu.pipeline_mode<synchronous>, transform_indices = @transform_1, window_bounds = array<i64: 576, 64>}, {pipeline_mode = #tpu.pipeline_mode<synchronous>, transform_indices = @transform_2, window_bounds = array<i64: 1, 64>}, {pipeline_mode = #tpu.pipeline_mode<synchronous>, transform_indices = @transform_3, window_bounds = array<i64: 1, 64>}, {transform_indices = @transform_4, window_bounds = array<i64: 32, 64>}]} {
    %c0 = arith.constant 0 : index
    %c0_0 = arith.constant 0 : index
    %0 = vector.load %arg1[%c0, %c0_0] : memref<32x576xbf16, #tpu.memory_space<vmem>>, vector<32x576xbf16>
    %c0_1 = arith.constant 0 : index
    %c0_2 = arith.constant 0 : index
    %1 = vector.load %arg2[%c0_1, %c0_2] : memref<576x64xbf16, #tpu.memory_space<vmem>>, vector<576x64xbf16>
    %cst = arith.constant dense<0.000000e+00> : vector<32x64xf32>
    %2 = tpu.matmul %0, %1, %cst {dimension_numbers = #tpu.dot_dimension_numbers<[1], [0], [0], [1], [0, 0, 1, 1], [], []>} : vector<32x576xbf16>, vector<576x64xbf16>, vector<32x64xf32> -> vector<32x64xf32>
    %c0_3 = arith.constant 0 : index
    %c0_4 = arith.constant 0 : index
    %3 = vector.load %arg3[%c0_3, %c0_4] : memref<1x64xf32, #tpu.memory_space<vmem>>, vector<1x64xf32>
    %4 = vector.broadcast %3 : vector<1x64xf32> to vector<32x64xf32>
    %5 = arith.mulf %2, %4 : vector<32x64xf32>
    %c0_5 = arith.constant 0 : index
    %c0_6 = arith.constant 0 : index
    %6 = vector.load %arg4[%c0_5, %c0_6] : memref<1x64xf32, #tpu.memory_space<vmem>>, vector<1x64xf32>
    %7 = vector.broadcast %6 : vector<1x64xf32> to vector<32x64xf32>
    %8 = arith.addf %5, %7 : vector<32x64xf32>
    %cst_7 = arith.constant 0.000000e+00 : f32
    %9 = vector.broadcast %cst_7 : f32 to vector<32x64xf32>
    %10 = arith.maximumf %8, %9 : vector<32x64xf32>
    %11 = arith.truncf %10 : vector<32x64xf32> to vector<32x64xbf16>
    %c0_8 = arith.constant 0 : index
    %c0_9 = arith.constant 0 : index
    %12 = vector.load %arg5[%c0_8, %c0_9] : memref<32x64xbf16, #tpu.memory_space<vmem>>, vector<32x64xbf16>
    tpu.vector_store %arg5[%c0_8, %c0_9], %11 {strides = array<i32>} : memref<32x64xbf16, #tpu.memory_space<vmem>>, vector<32x64xbf16>,
    return
  }
  func.func @transform_0(%arg0: i32) -> (i32, i32) {
    %c0_i32 = arith.constant 0 : i32
    %c0_i32_0 = arith.constant 0 : i32
    return %arg0, %c0_i32 : i32, i32
  }
  func.func @transform_1(%arg0: i32) -> (i32, i32) {
    %c0_i32 = arith.constant 0 : i32
    %c0_i32_0 = arith.constant 0 : i32
    %c0_i32_1 = arith.constant 0 : i32
    return %c0_i32, %c0_i32_0 : i32, i32
  }
  func.func @transform_2(%arg0: i32) -> (i32, i32) {
    %c0_i32 = arith.constant 0 : i32
    %c0_i32_0 = arith.constant 0 : i32
    %c0_i32_1 = arith.constant 0 : i32
    return %c0_i32, %c0_i32_0 : i32, i32
  }
  func.func @transform_3(%arg0: i32) -> (i32, i32) {
    %c0_i32 = arith.constant 0 : i32
    %c0_i32_0 = arith.constant 0 : i32
    %c0_i32_1 = arith.constant 0 : i32
    return %c0_i32, %c0_i32_0 : i32, i32
  }
  func.func @transform_4(%arg0: i32) -> (i32, i32) {
    %c0_i32 = arith.constant 0 : i32
    %c0_i32_0 = arith.constant 0 : i32
    return %arg0, %c0_i32 : i32, i32
  }
}

module attributes {stable_mosaic.version = 11 : i64} {
  func.func @_matmul_affine_kernel(%arg0: i32, %arg1: memref<32x64xbf16, #tpu.memory_space<vmem>>, %arg2: memref<64x256xbf16, #tpu.memory_space<vmem>>, %arg3: memref<1x256xf32, #tpu.memory_space<vmem>>, %arg4: memref<1x256xf32, #tpu.memory_space<vmem>>, %arg5: memref<32x256xbf16, #tpu.memory_space<vmem>>) attributes {dimension_semantics = [#tpu.dimension_semantics<parallel>], iteration_bounds = array<i64: 1>, scalar_prefetch = 0 : i64, scratch_operands = 0 : i64, tpu.core_type = #tpu.core_type<tc>, window_params = [{transform_indices = @transform_0, window_bounds = array<i64: 32, 64>}, {pipeline_mode = #tpu.pipeline_mode<synchronous>, transform_indices = @transform_1, window_bounds = array<i64: 64, 256>}, {pipeline_mode = #tpu.pipeline_mode<synchronous>, transform_indices = @transform_2, window_bounds = array<i64: 1, 256>}, {pipeline_mode = #tpu.pipeline_mode<synchronous>, transform_indices = @transform_3, window_bounds = array<i64: 1, 256>}, {transform_indices = @transform_4, window_bounds = array<i64: 32, 256>}]} {
    %c0 = arith.constant 0 : index
    %c0_0 = arith.constant 0 : index
    %0 = vector.load %arg1[%c0, %c0_0] : memref<32x64xbf16, #tpu.memory_space<vmem>>, vector<32x64xbf16>
    %c0_1 = arith.constant 0 : index
    %c0_2 = arith.constant 0 : index
    %1 = vector.load %arg2[%c0_1, %c0_2] : memref<64x256xbf16, #tpu.memory_space<vmem>>, vector<64x256xbf16>
    %cst = arith.constant dense<0.000000e+00> : vector<32x256xf32>
    %2 = tpu.matmul %0, %1, %cst {dimension_numbers = #tpu.dot_dimension_numbers<[1], [0], [0], [1], [0, 0, 1, 1], [], []>} : vector<32x64xbf16>, vector<64x256xbf16>, vector<32x256xf32> -> vector<32x256xf32>
    %c0_3 = arith.constant 0 : index
    %c0_4 = arith.constant 0 : index
    %3 = vector.load %arg3[%c0_3, %c0_4] : memref<1x256xf32, #tpu.memory_space<vmem>>, vector<1x256xf32>
    %4 = vector.broadcast %3 : vector<1x256xf32> to vector<32x256xf32>
    %5 = arith.mulf %2, %4 : vector<32x256xf32>
    %c0_5 = arith.constant 0 : index
    %c0_6 = arith.constant 0 : index
    %6 = vector.load %arg4[%c0_5, %c0_6] : memref<1x256xf32, #tpu.memory_space<vmem>>, vector<1x256xf32>
    %7 = vector.broadcast %6 : vector<1x256xf32> to vector<32x256xf32>
    %8 = arith.addf %5, %7 : vector<32x256xf32>
    %9 = arith.truncf %8 : vector<32x256xf32> to vector<32x256xbf16>
    %c0_7 = arith.constant 0 : index
    %c0_8 = arith.constant 0 : index
    %10 = vector.load %arg5[%c0_7, %c0_8] : memref<32x256xbf16, #tpu.memory_space<vmem>>, vector<32x256xbf16>
    tpu.vector_store %arg5[%c0_7, %c0_8], %9 {strides = array<i32>} : memref<32x256xbf16, #tpu.memory_space<vmem>>, vector<32x256xbf16>,
    return
  }
  func.func @transform_0(%arg0: i32) -> (i32, i32) {
    %c0_i32 = arith.constant 0 : i32
    %c0_i32_0 = arith.constant 0 : i32
    return %arg0, %c0_i32 : i32, i32
  }
  func.func @transform_1(%arg0: i32) -> (i32, i32) {
    %c0_i32 = arith.constant 0 : i32
    %c0_i32_0 = arith.constant 0 : i32
    %c0_i32_1 = arith.constant 0 : i32
    return %c0_i32, %c0_i32_0 : i32, i32
  }
  func.func @transform_2(%arg0: i32) -> (i32, i32) {
    %c0_i32 = arith.constant 0 : i32
    %c0_i32_0 = arith.constant 0 : i32
    %c0_i32_1 = arith.constant 0 : i32
    return %c0_i32, %c0_i32_0 : i32, i32
  }
  func.func @transform_3(%arg0: i32) -> (i32, i32) {
    %c0_i32 = arith.constant 0 : i32
    %c0_i32_0 = arith.constant 0 : i32
    %c0_i32_1 = arith.constant 0 : i32
    return %c0_i32, %c0_i32_0 : i32, i32
  }
  func.func @transform_4(%arg0: i32) -> (i32, i32) {
    %c0_i32 = arith.constant 0 : i32
    %c0_i32_0 = arith.constant 0 : i32
    return %arg0, %c0_i32 : i32, i32
  }
}

module attributes {stable_mosaic.version = 11 : i64} {
  func.func @_add_relu_kernel(%arg0: i32, %arg1: memref<32x256xbf16, #tpu.memory_space<vmem>>, %arg2: memref<32x256xbf16, #tpu.memory_space<vmem>>, %arg3: memref<32x256xbf16, #tpu.memory_space<vmem>>) attributes {dimension_semantics = [#tpu.dimension_semantics<parallel>], iteration_bounds = array<i64: 1>, scalar_prefetch = 0 : i64, scratch_operands = 0 : i64, tpu.core_type = #tpu.core_type<tc>, window_params = [{transform_indices = @transform_0, window_bounds = array<i64: 32, 256>}, {transform_indices = @transform_1, window_bounds = array<i64: 32, 256>}, {transform_indices = @transform_2, window_bounds = array<i64: 32, 256>}]} {
    %c0 = arith.constant 0 : index
    %c0_0 = arith.constant 0 : index
    %0 = vector.load %arg1[%c0, %c0_0] : memref<32x256xbf16, #tpu.memory_space<vmem>>, vector<32x256xbf16>
    %1 = arith.extf %0 : vector<32x256xbf16> to vector<32x256xf32>
    %c0_1 = arith.constant 0 : index
    %c0_2 = arith.constant 0 : index
    %2 = vector.load %arg2[%c0_1, %c0_2] : memref<32x256xbf16, #tpu.memory_space<vmem>>, vector<32x256xbf16>
    %3 = arith.extf %2 : vector<32x256xbf16> to vector<32x256xf32>
    %4 = arith.addf %1, %3 : vector<32x256xf32>
    %cst = arith.constant 0.000000e+00 : f32
    %5 = vector.broadcast %cst : f32 to vector<32x256xf32>
    %6 = arith.maximumf %4, %5 : vector<32x256xf32>
    %7 = arith.truncf %6 : vector<32x256xf32> to vector<32x256xbf16>
    %c0_3 = arith.constant 0 : index
    %c0_4 = arith.constant 0 : index
    %8 = vector.load %arg3[%c0_3, %c0_4] : memref<32x256xbf16, #tpu.memory_space<vmem>>, vector<32x256xbf16>
    tpu.vector_store %arg3[%c0_3, %c0_4], %7 {strides = array<i32>} : memref<32x256xbf16, #tpu.memory_space<vmem>>, vector<32x256xbf16>,
    return
  }
  func.func @transform_0(%arg0: i32) -> (i32, i32) {
    %c0_i32 = arith.constant 0 : i32
    %c0_i32_0 = arith.constant 0 : i32
    return %arg0, %c0_i32 : i32, i32
  }
  func.func @transform_1(%arg0: i32) -> (i32, i32) {
    %c0_i32 = arith.constant 0 : i32
    %c0_i32_0 = arith.constant 0 : i32
    return %arg0, %c0_i32 : i32, i32
  }
  func.func @transform_2(%arg0: i32) -> (i32, i32) {
    %c0_i32 = arith.constant 0 : i32
    %c0_i32_0 = arith.constant 0 : i32
    return %arg0, %c0_i32 : i32, i32
  }
}

module attributes {stable_mosaic.version = 11 : i64} {
  func.func @_matmul_affine_kernel(%arg0: i32, %arg1: memref<32x256xbf16, #tpu.memory_space<vmem>>, %arg2: memref<256x64xbf16, #tpu.memory_space<vmem>>, %arg3: memref<1x64xf32, #tpu.memory_space<vmem>>, %arg4: memref<1x64xf32, #tpu.memory_space<vmem>>, %arg5: memref<32x64xbf16, #tpu.memory_space<vmem>>) attributes {dimension_semantics = [#tpu.dimension_semantics<parallel>], iteration_bounds = array<i64: 1>, scalar_prefetch = 0 : i64, scratch_operands = 0 : i64, tpu.core_type = #tpu.core_type<tc>, window_params = [{transform_indices = @transform_0, window_bounds = array<i64: 32, 256>}, {pipeline_mode = #tpu.pipeline_mode<synchronous>, transform_indices = @transform_1, window_bounds = array<i64: 256, 64>}, {pipeline_mode = #tpu.pipeline_mode<synchronous>, transform_indices = @transform_2, window_bounds = array<i64: 1, 64>}, {pipeline_mode = #tpu.pipeline_mode<synchronous>, transform_indices = @transform_3, window_bounds = array<i64: 1, 64>}, {transform_indices = @transform_4, window_bounds = array<i64: 32, 64>}]} {
    %c0 = arith.constant 0 : index
    %c0_0 = arith.constant 0 : index
    %0 = vector.load %arg1[%c0, %c0_0] : memref<32x256xbf16, #tpu.memory_space<vmem>>, vector<32x256xbf16>
    %c0_1 = arith.constant 0 : index
    %c0_2 = arith.constant 0 : index
    %1 = vector.load %arg2[%c0_1, %c0_2] : memref<256x64xbf16, #tpu.memory_space<vmem>>, vector<256x64xbf16>
    %cst = arith.constant dense<0.000000e+00> : vector<32x64xf32>
    %2 = tpu.matmul %0, %1, %cst {dimension_numbers = #tpu.dot_dimension_numbers<[1], [0], [0], [1], [0, 0, 1, 1], [], []>} : vector<32x256xbf16>, vector<256x64xbf16>, vector<32x64xf32> -> vector<32x64xf32>
    %c0_3 = arith.constant 0 : index
    %c0_4 = arith.constant 0 : index
    %3 = vector.load %arg3[%c0_3, %c0_4] : memref<1x64xf32, #tpu.memory_space<vmem>>, vector<1x64xf32>
    %4 = vector.broadcast %3 : vector<1x64xf32> to vector<32x64xf32>
    %5 = arith.mulf %2, %4 : vector<32x64xf32>
    %c0_5 = arith.constant 0 : index
    %c0_6 = arith.constant 0 : index
    %6 = vector.load %arg4[%c0_5, %c0_6] : memref<1x64xf32, #tpu.memory_space<vmem>>, vector<1x64xf32>
    %7 = vector.broadcast %6 : vector<1x64xf32> to vector<32x64xf32>
    %8 = arith.addf %5, %7 : vector<32x64xf32>
    %cst_7 = arith.constant 0.000000e+00 : f32
    %9 = vector.broadcast %cst_7 : f32 to vector<32x64xf32>
    %10 = arith.maximumf %8, %9 : vector<32x64xf32>
    %11 = arith.truncf %10 : vector<32x64xf32> to vector<32x64xbf16>
    %c0_8 = arith.constant 0 : index
    %c0_9 = arith.constant 0 : index
    %12 = vector.load %arg5[%c0_8, %c0_9] : memref<32x64xbf16, #tpu.memory_space<vmem>>, vector<32x64xbf16>
    tpu.vector_store %arg5[%c0_8, %c0_9], %11 {strides = array<i32>} : memref<32x64xbf16, #tpu.memory_space<vmem>>, vector<32x64xbf16>,
    return
  }
  func.func @transform_0(%arg0: i32) -> (i32, i32) {
    %c0_i32 = arith.constant 0 : i32
    %c0_i32_0 = arith.constant 0 : i32
    return %arg0, %c0_i32 : i32, i32
  }
  func.func @transform_1(%arg0: i32) -> (i32, i32) {
    %c0_i32 = arith.constant 0 : i32
    %c0_i32_0 = arith.constant 0 : i32
    %c0_i32_1 = arith.constant 0 : i32
    return %c0_i32, %c0_i32_0 : i32, i32
  }
  func.func @transform_2(%arg0: i32) -> (i32, i32) {
    %c0_i32 = arith.constant 0 : i32
    %c0_i32_0 = arith.constant 0 : i32
    %c0_i32_1 = arith.constant 0 : i32
    return %c0_i32, %c0_i32_0 : i32, i32
  }
  func.func @transform_3(%arg0: i32) -> (i32, i32) {
    %c0_i32 = arith.constant 0 : i32
    %c0_i32_0 = arith.constant 0 : i32
    %c0_i32_1 = arith.constant 0 : i32
    return %c0_i32, %c0_i32_0 : i32, i32
  }
  func.func @transform_4(%arg0: i32) -> (i32, i32) {
    %c0_i32 = arith.constant 0 : i32
    %c0_i32_0 = arith.constant 0 : i32
    return %arg0, %c0_i32 : i32, i32
  }
}

</mosaic_0001>

<llo_original>
// kernel: tile.0
$region0: #{tile.0}
  %s0 = inlined_call_operand.vmem [shape: f32[2,3], index: 0, kind: input, shape index: {}]
  %s1 = inlined_call_operand.vmem [shape: f32[6,1], index: 1, kind: output, shape index: {}]
  $region1: #{tile.0} parent=0
    #allocation0 [shape = 'u8[4096]{0}', space=vmem, size = 0x1000, scoped, tag = 'scoped mem for input reshape']
    %s3 = ssub.s32 4, 1
    %v4 = vld [vmem:[%s0] sm:%s3]
    %5 = vst [vmem:[#allocation0] sm:%s3] %v4
    %v6 = vld [vmem:[#allocation0] sm:$0x3]
    %vm7 = vcmask 7168
    %8 = vst.msk [vmem:[%s1] ss:$3 sm:$0x3] %vm7, %v6
    %v9 = vld [vmem:[#allocation0] sm:$0x3]
    %10 = vrot.lane.b32.xlu0 %v9, 127
    %v11 = vpop.permute.xlu0 %10
    %vm12 = vcmask 7168
    %s13 = scalar_lea.vmem %s1, 1
    %14 = vst.msk [vmem:[%s13] ss:$3 sm:$0x3] %vm12, %v11
    %v15 = vld [vmem:[#allocation0] sm:$0x3]
    %16 = vrot.lane.b32.xlu0 %v15, 126
    %v17 = vpop.permute.xlu0 %16
    %vm18 = vcmask 7168
    %s19 = scalar_lea.vmem %s1, 2
    %20 = vst.msk [vmem:[%s19] ss:$3 sm:$0x3] %vm18, %v17

// kernel: tile.10
$region0: #{tile.10}
  #allocation0 [shape = 's32[1]{0}', space=sflag, size = 0x4, scoped, tag = 'scoped memory for tile.10']
  %s0 = inlined_call_operand.vmem [shape: f32[3], index: 0, kind: input, shape index: {}]
  %s1 = inlined_call_operand.vmem [shape: f32[2,3], index: 1, kind: output, shape index: {}]
  // Predicated region
  $region2: #{tile.10} parent=0 // pred_check
    _
  $region3: #{tile.10} parent=0 // pred_check_branch
    %3 = sbr.rel (0) target = $region5
  $region4: #{tile.10} parent=0 // pred_region
    _
  $region5: #{tile.10} parent=0 // pred_fallthru
    _
  %v4 = vld [vmem:[%s0] ss:$0 sm:$0xff]
  %5 = vst [vmem:[%s1] sm:$0x3] %v4

// kernel: _lambda_.16
$region0: #{_lambda_.16}
  #allocation0 [shape = 'u32[]', space=smem, size = 0x4, offset = 0x4, fixed_abs, tag = 'smem constant byte address 0x4 - core index']
  #allocation1 [shape = 'u32[72,128]{1,0:T(1,128)}', space=vmem, size = 0x9000, scoped, tag = 'internal scratch']
  %s0 = inlined_call_operand.vmem [shape: f32[6,256], index: 0, kind: input, shape index: {}]
  %s1 = inlined_call_operand.vmem [shape: f32[6,1], index: 1, kind: input, shape index: {}]
  %s2 = inlined_call_operand.vmem [shape: f32[6,1], index: 2, kind: input, shape index: {}]
  %s3 = inlined_call_operand.vmem [shape: bf16[6,256], index: 3, kind: output, shape index: {}]
  %s4 = sld [smem:[#allocation0]]
  $region22: #{_lambda_.16} parent=0
    _
  %s6 = ssub.s32 1, %s4
  %s7 = scalar_select 0, %s6, %s4
  // Predicated region
  $region2: #{_lambda_.16} parent=0 // pred_check
    _
  $region3: #{_lambda_.16} parent=0 // pred_check_branch
    %9 = sbr.rel (0) target = $region5
  $region4: #{_lambda_.16} parent=0 // pred_region
    _
  $region5: #{_lambda_.16} parent=0 // pred_fallthru
    _
  // Predicated region
  $region6: #{_lambda_.16} parent=0 // pred_check
    _
  $region7: #{_lambda_.16} parent=0 // pred_check_branch
    %11 = sbr.rel (0) target = $region9
  $region8: #{_lambda_.16} parent=0 // pred_region
    _
  $region9: #{_lambda_.16} parent=0 // pred_fallthru
    _
  // Predicated region
  $region10: #{_lambda_.16} parent=0 // pred_check
    _
  $region11: #{_lambda_.16} parent=0 // pred_check_branch
    %13 = sbr.rel (0) target = $region13
  $region12: #{_lambda_.16} parent=0 // pred_region
    _
  $region13: #{_lambda_.16} parent=0 // pred_fallthru
    _
  %v14 = vld [vmem:[%s0] sm:$0x3f]
  %v15 = vld [vmem:[%s0 + $0x8] sm:$0x3f]
  %v16 = vld [vmem:[%s1] sm:$0x3f]
  %18 = vset.pattern.permute.xlu0 0
  %19 = vperm.xlu0 %18, %v16
  %v20 = vpop.permute.xlu0 %19
  %v22 = vmul.f32 %v14, %v20
  %v23 = vmul.f32 %v15, %v20
  %v24 = vld [vmem:[%s2] sm:$0x3f]
  %26 = vset.pattern.permute.xlu0 0
  %27 = vperm.xlu0 %26, %v24
  %v28 = vpop.permute.xlu0 %27
  %v30 = vadd.f32 %v22, %v28
  %v31 = vadd.f32 %v23, %v28
  %v32 = vpack.c.bf16 %v31, %v30
  %33 = vst [vmem:[%s3] sm:$0x77] %v32
  // Predicated region
  $region14: #{_lambda_.16} parent=0 // pred_check
    _
  $region15: #{_lambda_.16} parent=0 // pred_check_branch
    %35 = sbr.rel (0) target = $region17
  $region16: #{_lambda_.16} parent=0 // pred_region
    _
  $region17: #{_lambda_.16} parent=0 // pred_fallthru
    _
  // Predicated region
  $region18: #{_lambda_.16} parent=0 // pred_check
    _
  $region19: #{_lambda_.16} parent=0 // pred_check_branch
    %37 = sbr.rel (0) target = $region21
  $region20: #{_lambda_.16} parent=0 // pred_region
    _
  $region21: #{_lambda_.16} parent=0 // pred_fallthru
    _

// kernel: _lambda_.17
$region0: #{_lambda_.17}
  #allocation0 [shape = 'u32[]', space=smem, size = 0x4, offset = 0x4, fixed_abs, tag = 'smem constant byte address 0x4 - core index']
  #allocation1 [shape = 'u32[72,128]{1,0:T(1,128)}', space=vmem, size = 0x9000, scoped, tag = 'internal scratch']
  %s0 = inlined_call_operand.vmem [shape: bf16[128,147], index: 0, kind: input, shape index: {}]
  %s1 = inlined_call_operand.vmem [shape: bf16[147,64], index: 1, kind: input, shape index: {}]
  %s2 = inlined_call_operand.vmem [shape: f32[1,64], index: 2, kind: input, shape index: {}]
  %s3 = inlined_call_operand.vmem [shape: f32[1,64], index: 3, kind: input, shape index: {}]
  %s4 = inlined_call_operand.vmem [shape: bf16[128,64], index: 4, kind: output, shape index: {}]
  %s5 = sld [smem:[#allocation0]]
  $region26: #{_lambda_.17} parent=0
    _
  %s7 = ssub.s32 1, %s5
  %s8 = scalar_select 0, %s7, %s5
  // Predicated region
  $region2: #{_lambda_.17} parent=0 // pred_check
    _
  $region3: #{_lambda_.17} parent=0 // pred_check_branch
    %10 = sbr.rel (0) target = $region5
  $region4: #{_lambda_.17} parent=0 // pred_region
    _
  $region5: #{_lambda_.17} parent=0 // pred_fallthru
    _
  // Predicated region
  $region6: #{_lambda_.17} parent=0 // pred_check
    _
  $region7: #{_lambda_.17} parent=0 // pred_check_branch
    %12 = sbr.rel (0) target = $region9
  $region8: #{_lambda_.17} parent=0 // pred_region
    _
  $region9: #{_lambda_.17} parent=0 // pred_fallthru
    _
  // Predicated region
  $region10: #{_lambda_.17} parent=0 // pred_check
    _
  $region11: #{_lambda_.17} parent=0 // pred_check_branch
    %14 = sbr.rel (0) target = $region13
  $region12: #{_lambda_.17} parent=0 // pred_region
    _
  $region13: #{_lambda_.17} parent=0 // pred_fallthru
    _
  // Predicated region
  $region14: #{_lambda_.17} parent=0 // pred_check
    _
  $region15: #{_lambda_.17} parent=0 // pred_check_branch
    %16 = sbr.rel (0) target = $region17
  $region16: #{_lambda_.17} parent=0 // pred_region
    _
  $region17: #{_lambda_.17} parent=0 // pred_fallthru
    _
  %v18 = vld [vmem:[%s0] sm:$0xff]
  %v19 = vld [vmem:[%s0 + $0x8] sm:$0xff]
  %v20 = vld [vmem:[%s0 + $0x10] sm:$0xff]
  %v21 = vld [vmem:[%s0 + $0x18] sm:$0xff]
  %v22 = vld [vmem:[%s0 + $0x20] sm:$0xff]
  %v23 = vld [vmem:[%s0 + $0x28] sm:$0xff]
  %v24 = vld [vmem:[%s0 + $0x30] sm:$0xff]
  %v25 = vld [vmem:[%s0 + $0x38] sm:$0xff]
  %v26 = vld [vmem:[%s0 + $0x40] sm:$0xff]
  %v27 = vld [vmem:[%s0 + $0x48] sm:$0xff]
  %v28 = vld [vmem:[%s0 + $0x50] sm:$0xff]
  %v29 = vld [vmem:[%s0 + $0x58] sm:$0xff]
  %v30 = vld [vmem:[%s0 + $0x60] sm:$0xff]
  %v31 = vld [vmem:[%s0 + $0x68] sm:$0xff]
  %v32 = vld [vmem:[%s0 + $0x70] sm:$0xff]
  %v33 = vld [vmem:[%s0 + $0x78] sm:$0xff]
  %v34 = vld [vmem:[%s1] sm:$0xf]
  %v35 = vld [vmem:[%s1 + $0x4] sm:$0xf]
  %v36 = vld [vmem:[%s1 + $0x8] sm:$0xf]
  %v37 = vld [vmem:[%s1 + $0xc] sm:$0xf]
  %v38 = vld [vmem:[%s1 + $0x10] sm:$0xf]
  %v39 = vld [vmem:[%s1 + $0x14] sm:$0xf]
  %v40 = vld [vmem:[%s1 + $0x18] sm:$0xf]
  %v41 = vld [vmem:[%s1 + $0x1c] sm:$0xf]
  %v42 = vld [vmem:[%s1 + $0x20] sm:$0xf]
  %v43 = vld [vmem:[%s1 + $0x24] sm:$0xf]
  %v44 = vld [vmem:[%s1 + $0x28] sm:$0xf]
  %v45 = vld [vmem:[%s1 + $0x2c] sm:$0xf]
  %v46 = vld [vmem:[%s1 + $0x30] sm:$0xf]
  %v47 = vld [vmem:[%s1 + $0x34] sm:$0xf]
  %v48 = vld [vmem:[%s1 + $0x38] sm:$0xf]
  %v49 = vld [vmem:[%s1 + $0x3c] sm:$0xf]
  %v50 = vld [vmem:[%s1 + $0x40] sm:$0xf]
  %v51 = vld [vmem:[%s1 + $0x44] sm:$0xf]
  %v52 = vld [vmem:[%s1 + $0x48] sm:$0x3]
  %v69 = vunpack.c.l.b16 %v18
  %v70 = vunpack.c.h.b16 %v18
  %v71 = vunpack.c.l.b16 %v19
  %v72 = vunpack.c.h.b16 %v19
  %v73 = vunpack.c.l.b16 %v20
  %v74 = vunpack.c.h.b16 %v20
  %v75 = vunpack.c.l.b16 %v21
  %v76 = vunpack.c.h.b16 %v21
  %v77 = vunpack.c.l.b16 %v22
  %v78 = vunpack.c.h.b16 %v22
  %v79 = vunpack.c.l.b16 %v23
  %v80 = vunpack.c.h.b16 %v23
  %v81 = vunpack.c.l.b16 %v24
  %v82 = vunpack.c.h.b16 %v24
  %v83 = vunpack.c.l.b16 %v25
  %v84 = vunpack.c.h.b16 %v25
  %v85 = vunpack.c.l.b16 %v26
  %v86 = vunpack.c.h.b16 %v26
  %v87 = vunpack.c.l.b16 %v27
  %v88 = vunpack.c.h.b16 %v27
  %v89 = vunpack.c.l.b16 %v28
  %v90 = vunpack.c.h.b16 %v28
  %v91 = vunpack.c.l.b16 %v29
  %v92 = vunpack.c.h.b16 %v29
  %v93 = vunpack.c.l.b16 %v30
  %v94 = vunpack.c.h.b16 %v30
  %v95 = vunpack.c.l.b16 %v31
  %v96 = vunpack.c.h.b16 %v31
  %v97 = vunpack.c.l.b16 %v32
  %v98 = vunpack.c.h.b16 %v32
  %v99 = vunpack.c.l.b16 %v33
  %v100 = vunpack.c.h.b16 %v33
  %v101 = vpack.c.b16 %v71, %v69
  %v102 = vpack.c.b16 %v72, %v70
  %v103 = vpack.c.b16 %v75, %v73
  %v104 = vpack.c.b16 %v76, %v74
  %v105 = vpack.c.b16 %v79, %v77
  %v106 = vpack.c.b16 %v80, %v78
  %v107 = vpack.c.b16 %v83, %v81
  %v108 = vpack.c.b16 %v84, %v82
  %v109 = vpack.c.b16 %v87, %v85
  %v110 = vpack.c.b16 %v88, %v86
  %v111 = vpack.c.b16 %v91, %v89
  %v112 = vpack.c.b16 %v92, %v90
  %v113 = vpack.c.b16 %v95, %v93
  %v114 = vpack.c.b16 %v96, %v94
  %v115 = vpack.c.b16 %v99, %v97
  %v116 = vpack.c.b16 %v100, %v98
  %v144 = vunpack.c.l.b16 %v34
  %v145 = vunpack.c.l.b16 %v35
  %v146 = vunpack.c.l.b16 %v36
  %v147 = vunpack.c.l.b16 %v37
  %v148 = vunpack.c.l.b16 %v38
  %v149 = vunpack.c.l.b16 %v39
  %v150 = vunpack.c.l.b16 %v40
  %v151 = vunpack.c.l.b16 %v41
  %v152 = vunpack.c.l.b16 %v42
  %v153 = vunpack.c.l.b16 %v43
  %v154 = vunpack.c.l.b16 %v44
  %v155 = vunpack.c.l.b16 %v45
  %v156 = vunpack.c.l.b16 %v46
  %v157 = vunpack.c.l.b16 %v47
  %v158 = vunpack.c.l.b16 %v48
  %v159 = vunpack.c.l.b16 %v49
  %v160 = vunpack.c.l.b16 %v50
  %v161 = vunpack.c.l.b16 %v51
  %v162 = vunpack.c.l.b16 %v52
  %v163 = vpack.c.b16 %v145, %v144
  %v164 = vpack.c.b16 %v147, %v146
  %v165 = vpack.c.b16 %v149, %v148
  %v166 = vpack.c.b16 %v151, %v150
  %v167 = vpack.c.b16 %v153, %v152
  %v168 = vpack.c.b16 %v155, %v154
  %v169 = vpack.c.b16 %v157, %v156
  %v170 = vpack.c.b16 %v159, %v158
  %v171 = vpack.c.b16 %v161, %v160
  %v172 = vpack.c.b16 %v162, %v162
  %vm182 = vcmask 154624
  %v184 = vsel %vm182, %v102, 0
  %v187 = vsel %vm182, %v104, 0
  %v190 = vsel %vm182, %v106, 0
  %v193 = vsel %vm182, %v108, 0
  %v196 = vsel %vm182, %v110, 0
  %v199 = vsel %vm182, %v112, 0
  %v202 = vsel %vm182, %v114, 0
  %v205 = vsel %vm182, %v116, 0
  %vm207 = vcmask 1040384
  %vm208 = vcmask 1041408
  %v209 = vsel %vm207, 4294967295, 65535
  %v210 = vsel %vm208, %v209, 0
  %v212 = vand.u32 %v172, %v210
  %214 = vmatpush.bf16.msra.mxu0 %v170
  %215 = vmatpush.bf16.msra.mxu0 %v169
  %216 = vmatpush.bf16.msra.mxu0 %v168
  %217 = vmatpush.bf16.msra.mxu0 %v167
  %218 = vmatpush.bf16.msra.mxu0 %v166
  %219 = vmatpush.bf16.msra.mxu0 %v165
  %220 = vmatpush.bf16.msra.mxu0 %v164
  %221 = vmatpush.bf16.msra.mxu0 %v163
  %222 = vmatmul.bf16.gmra.mxu0 %v101
  %v223 = vpop.f32.mrf.mxu0
  %v224 = vadd.f32 0.0, %v223
  %v225 = vpop.f32.mrf.mxu0
  %v226 = vadd.f32 0.0, %v225
  %227 = vmatmul.bf16.gmra.mxu0 %v103
  %v228 = vpop.f32.mrf.mxu0
  %v229 = vadd.f32 0.0, %v228
  %v230 = vpop.f32.mrf.mxu0
  %v231 = vadd.f32 0.0, %v230
  %232 = vmatmul.bf16.gmra.mxu0 %v105
  %v233 = vpop.f32.mrf.mxu0
  %v234 = vadd.f32 0.0, %v233
  %v235 = vpop.f32.mrf.mxu0
  %v236 = vadd.f32 0.0, %v235
  %237 = vmatmul.bf16.gmra.mxu0 %v107
  %v238 = vpop.f32.mrf.mxu0
  %v239 = vadd.f32 0.0, %v238
  %v240 = vpop.f32.mrf.mxu0
  %v241 = vadd.f32 0.0, %v240
  %242 = vmatmul.bf16.gmra.mxu0 %v109
  %v243 = vpop.f32.mrf.mxu0
  %v244 = vadd.f32 0.0, %v243
  %v245 = vpop.f32.mrf.mxu0
  %v246 = vadd.f32 0.0, %v245
  %247 = vmatmul.bf16.gmra.mxu0 %v111
  %v248 = vpop.f32.mrf.mxu0
  %v249 = vadd.f32 0.0, %v248
  %v250 = vpop.f32.mrf.mxu0
  %v251 = vadd.f32 0.0, %v250
  %252 = vmatmul.bf16.gmra.mxu0 %v113
  %v253 = vpop.f32.mrf.mxu0
  %v254 = vadd.f32 0.0, %v253
  %v255 = vpop.f32.mrf.mxu0
  %v256 = vadd.f32 0.0, %v255
  %257 = vmatmul.bf16.gmra.mxu0 %v115
  %v258 = vpop.f32.mrf.mxu0
  %v259 = vadd.f32 0.0, %v258
  %v260 = vpop.f32.mrf.mxu0
  %v261 = vadd.f32 0.0, %v260
  %262 = vdwg.mxu0
  %263 = vmatpush.bf16.msra.mxu0 0
  %264 = vmatpush.bf16.msra.mxu0 0
  %265 = vmatpush.bf16.msra.mxu0 0
  %266 = vmatpush.bf16.msra.mxu0 0
  %267 = vmatpush.bf16.msra.mxu0 0
  %268 = vmatpush.bf16.msra.mxu0 0
  %269 = vmatpush.bf16.msra.mxu0 %v212
  %270 = vmatpush.bf16.msra.mxu0 %v171
  %271 = vmatmul.bf16.gmra.mxu0 %v184
  %v272 = vpop.f32.mrf.mxu0
  %v273 = vadd.f32 %v224, %v272
  %v274 = vpop.f32.mrf.mxu0
  %v275 = vadd.f32 %v226, %v274
  %276 = vmatmul.bf16.gmra.mxu0 %v187
  %v277 = vpop.f32.mrf.mxu0
  %v278 = vadd.f32 %v229, %v277
  %v279 = vpop.f32.mrf.mxu0
  %v280 = vadd.f32 %v231, %v279
  %281 = vmatmul.bf16.gmra.mxu0 %v190
  %v282 = vpop.f32.mrf.mxu0
  %v283 = vadd.f32 %v234, %v282
  %v284 = vpop.f32.mrf.mxu0
  %v285 = vadd.f32 %v236, %v284
  %286 = vmatmul.bf16.gmra.mxu0 %v193
  %v287 = vpop.f32.mrf.mxu0
  %v288 = vadd.f32 %v239, %v287
  %v289 = vpop.f32.mrf.mxu0
  %v290 = vadd.f32 %v241, %v289
  %291 = vmatmul.bf16.gmra.mxu0 %v196
  %v292 = vpop.f32.mrf.mxu0
  %v293 = vadd.f32 %v244, %v292
  %v294 = vpop.f32.mrf.mxu0
  %v295 = vadd.f32 %v246, %v294
  %296 = vmatmul.bf16.gmra.mxu0 %v199
  %v297 = vpop.f32.mrf.mxu0
  %v298 = vadd.f32 %v249, %v297
  %v299 = vpop.f32.mrf.mxu0
  %v300 = vadd.f32 %v251, %v299
  %301 = vmatmul.bf16.gmra.mxu0 %v202
  %v302 = vpop.f32.mrf.mxu0
  %v303 = vadd.f32 %v254, %v302
  %v304 = vpop.f32.mrf.mxu0
  %v305 = vadd.f32 %v256, %v304
  %306 = vmatmul.bf16.gmra.mxu0 %v205
  %v307 = vpop.f32.mrf.mxu0
  %v308 = vadd.f32 %v259, %v307
  %v309 = vpop.f32.mrf.mxu0
  %v310 = vadd.f32 %v261, %v309
  %311 = vdwg.mxu0
  %v312 = vld [vmem:[%s2] sm:$0x1]
  %v314 = vperm.slane %v312, 0
  %v316 = vmul.f32 %v273, %v314
  %v317 = vmul.f32 %v275, %v314
  %v318 = vmul.f32 %v278, %v314
  %v319 = vmul.f32 %v280, %v314
  %v320 = vmul.f32 %v283, %v314
  %v321 = vmul.f32 %v285, %v314
  %v322 = vmul.f32 %v288, %v314
  %v323 = vmul.f32 %v290, %v314
  %v324 = vmul.f32 %v293, %v314
  %v325 = vmul.f32 %v295, %v314
  %v326 = vmul.f32 %v298, %v314
  %v327 = vmul.f32 %v300, %v314
  %v328 = vmul.f32 %v303, %v314
  %v329 = vmul.f32 %v305, %v314
  %v330 = vmul.f32 %v308, %v314
  %v331 = vmul.f32 %v310, %v314
  %v332 = vld [vmem:[%s3] sm:$0x1]
  %v334 = vperm.slane %v332, 0
  %v336 = vadd.f32 %v316, %v334
  %v337 = vadd.f32 %v317, %v334
  %v338 = vadd.f32 %v318, %v334
  %v339 = vadd.f32 %v319, %v334
  %v340 = vadd.f32 %v320, %v334
  %v341 = vadd.f32 %v321, %v334
  %v342 = vadd.f32 %v322, %v334
  %v343 = vadd.f32 %v323, %v334
  %v344 = vadd.f32 %v324, %v334
  %v345 = vadd.f32 %v325, %v334
  %v346 = vadd.f32 %v326, %v334
  %v347 = vadd.f32 %v327, %v334
  %v348 = vadd.f32 %v328, %v334
  %v349 = vadd.f32 %v329, %v334
  %v350 = vadd.f32 %v330, %v334
  %v351 = vadd.f32 %v331, %v334
  %v352 = vmax.f32 %v336, 0.0
  %v353 = vmax.f32 %v337, 0.0
  %v354 = vmax.f32 %v338, 0.0
  %v355 = vmax.f32 %v339, 0.0
  %v356 = vmax.f32 %v340, 0.0
  %v357 = vmax.f32 %v341, 0.0
  %v358 = vmax.f32 %v342, 0.0
  %v359 = vmax.f32 %v343, 0.0
  %v360 = vmax.f32 %v344, 0.0
  %v361 = vmax.f32 %v345, 0.0
  %v362 = vmax.f32 %v346, 0.0
  %v363 = vmax.f32 %v347, 0.0
  %v364 = vmax.f32 %v348, 0.0
  %v365 = vmax.f32 %v349, 0.0
  %v366 = vmax.f32 %v350, 0.0
  %v367 = vmax.f32 %v351, 0.0
  %v368 = vpack.c.bf16 %v352, %v352
  %v369 = vpack.c.bf16 %v353, %v353
  %v370 = vpack.c.bf16 %v354, %v354
  %v371 = vpack.c.bf16 %v355, %v355
  %v372 = vpack.c.bf16 %v356, %v356
  %v373 = vpack.c.bf16 %v357, %v357
  %v374 = vpack.c.bf16 %v358, %v358
  %v375 = vpack.c.bf16 %v359, %v359
  %v376 = vpack.c.bf16 %v360, %v360
  %v377 = vpack.c.bf16 %v361, %v361
  %v378 = vpack.c.bf16 %v362, %v362
  %v379 = vpack.c.bf16 %v363, %v363
  %v380 = vpack.c.bf16 %v364, %v364
  %v381 = vpack.c.bf16 %v365, %v365
  %v382 = vpack.c.bf16 %v366, %v366
  %v383 = vpack.c.bf16 %v367, %v367
  %vm384 = vcmask 519168
  %385 = vst.msk [vmem:[%s4] sm:$0xf] %vm384, %v368
  %386 = vst.msk [vmem:[%s4 + $0x4] sm:$0xf] %vm384, %v369
  %387 = vst.msk [vmem:[%s4 + $0x8] sm:$0xf] %vm384, %v370
  %388 = vst.msk [vmem:[%s4 + $0xc] sm:$0xf] %vm384, %v371
  %389 = vst.msk [vmem:[%s4 + $0x10] sm:$0xf] %vm384, %v372
  %390 = vst.msk [vmem:[%s4 + $0x14] sm:$0xf] %vm384, %v373
  %391 = vst.msk [vmem:[%s4 + $0x18] sm:$0xf] %vm384, %v374
  %392 = vst.msk [vmem:[%s4 + $0x1c] sm:$0xf] %vm384, %v375
  %393 = vst.msk [vmem:[%s4 + $0x20] sm:$0xf] %vm384, %v376
  %394 = vst.msk [vmem:[%s4 + $0x24] sm:$0xf] %vm384, %v377
  %395 = vst.msk [vmem:[%s4 + $0x28] sm:$0xf] %vm384, %v378
  %396 = vst.msk [vmem:[%s4 + $0x2c] sm:$0xf] %vm384, %v379
  %397 = vst.msk [vmem:[%s4 + $0x30] sm:$0xf] %vm384, %v380
  %398 = vst.msk [vmem:[%s4 + $0x34] sm:$0xf] %vm384, %v381
  %399 = vst.msk [vmem:[%s4 + $0x38] sm:$0xf] %vm384, %v382
  %400 = vst.msk [vmem:[%s4 + $0x3c] sm:$0xf] %vm384, %v383
  // Predicated region
  $region18: #{_lambda_.17} parent=0 // pred_check
    _
  $region19: #{_lambda_.17} parent=0 // pred_check_branch
    %402 = sbr.rel (0) target = $region21
  $region20: #{_lambda_.17} parent=0 // pred_region
    _
  $region21: #{_lambda_.17} parent=0 // pred_fallthru
    _
  // Predicated region
  $region22: #{_lambda_.17} parent=0 // pred_check
    _
  $region23: #{_lambda_.17} parent=0 // pred_check_branch
    %404 = sbr.rel (0) target = $region25
  $region24: #{_lambda_.17} parent=0 // pred_region
    _
  $region25: #{_lambda_.17} parent=0 // pred_fallthru
    _

// kernel: _lambda_.18
$region0: #{_lambda_.18}
  #allocation0 [shape = 'u32[]', space=smem, size = 0x4, offset = 0x4, fixed_abs, tag = 'smem constant byte address 0x4 - core index']
  #allocation1 [shape = 'u32[72,128]{1,0:T(1,128)}', space=vmem, size = 0x9000, scoped, tag = 'internal scratch']
  %s0 = inlined_call_operand.vmem [shape: bf16[2,10,4,64], index: 0, kind: input, shape index: {}, may-alias: {0,1,2}]
  %s1 = inlined_call_operand.vmem [shape: bf16[2,10,4,64], index: 1, kind: input, shape index: {}, may-alias: {0,1,2}]
  %s2 = inlined_call_operand.vmem [shape: bf16[2,10,4,64], index: 2, kind: input, shape index: {}, may-alias: {0,1,2}]
  %s3 = inlined_call_operand.vmem [shape: bf16[2,10,4,64], index: 3, kind: input, shape index: {}, may-alias: {3,4,5}]
  %s4 = inlined_call_operand.vmem [shape: bf16[2,10,4,64], index: 4, kind: input, shape index: {}, may-alias: {3,4,5}]
  %s5 = inlined_call_operand.vmem [shape: bf16[2,10,4,64], index: 5, kind: input, shape index: {}, may-alias: {3,4,5}]
  %s6 = inlined_call_operand.vmem [shape: bf16[2,10,4,64], index: 6, kind: input, shape index: {}, may-alias: {6,7,8}]
  %s7 = inlined_call_operand.vmem [shape: bf16[2,10,4,64], index: 7, kind: input, shape index: {}, may-alias: {6,7,8}]
  %s8 = inlined_call_operand.vmem [shape: bf16[2,10,4,64], index: 8, kind: input, shape index: {}, may-alias: {6,7,8}]
  %s9 = inlined_call_operand.vmem [shape: bf16[2,4,4,64], index: 9, kind: output, shape index: {}]
  %s10 = sld [smem:[#allocation0]]
  $region69: #{_lambda_.18} parent=0
    _
  %s12 = ssub.s32 1, %s10
  %s13 = scalar_select 0, %s12, %s10
  loop: start=0, step=1, limit=10
  $region2: #{_lambda_.18} parent=0 // loop_pre_header
    _
  $region3: #{_lambda_.18} parent=0 // loop_header
    %s15 = sphi 0, %s19
    %p16 = scmp.ge.s32.totalorder %s15, 10
    %s22 = sphi 0, %s34
    %s23 = sphi 0, %s30
    %s24 = sphi 0, %s22
    %s25 = sphi 0, %s23
    %s26 = sphi 0, %s24
    %s27 = sphi 0, %s25
    %s41 = sphi 0, %s43
    %s44 = sphi 0, %s41
    %s45 = sphi 0, %s44
    %s61 = sphi 0, %s45
    %s73 = sphi 0, %s75
    %s76 = sphi 0, %s73
    %s77 = sphi 0, %s76
    %s93 = sphi 0, %s77
    %s105 = sphi 0, %s107
    %s108 = sphi 0, %s105
    %s109 = sphi 0, %s108
    %s125 = sphi 0, %s109
    %s135 = sphi 0, %s137
    %s138 = sphi 0, %s135
    %s139 = sphi 0, %s138
    %s155 = sphi 0, %s139
    %s167 = sphi 0, %s169
    %s170 = sphi 0, %s167
    %s171 = sphi 0, %s170
    %s187 = sphi 0, %s171
    %s199 = sphi 0, %s201
    %s202 = sphi 0, %s199
    %s203 = sphi 0, %s202
    %s219 = sphi 0, %s203
    %s229 = sphi 0, %s231
    %s232 = sphi 0, %s229
    %s233 = sphi 0, %s232
    %s249 = sphi 0, %s233
    %s261 = sphi 0, %s263
    %s264 = sphi 0, %s261
    %s265 = sphi 0, %s264
    %s281 = sphi 0, %s265
    %s293 = sphi 0, %s295
    %s296 = sphi 0, %s293
    %s297 = sphi 0, %s296
    %s313 = sphi 0, %s297
    %s321 = sphi 0, %s323
    %s324 = sphi 0, %s321
    %s325 = sphi 0, %s324
    %s341 = sphi 0, %s325
  $region4: #{_lambda_.18} parent=0 // loop_header_branch
    %18 = sbr.rel (%p16) target = $region8
  $region5: #{_lambda_.18} parent=0 // loop_body
    %s20 = ssub.s32 %s15, 1
    %s21 = ssub.s32 %s15, 2
    %s28 = sadd.s32 1, %s23
    %p29 = scmp.ge.s32.totalorder %s28, 4
    %s30 = scalar_select %p29, 0, %s28
    %s31 = sadd.s32 1, %s22
    %s32 = scalar_select %p29, %s31, %s22
    %p33 = scmp.ge.s32.totalorder %s32, 2
    %s34 = scalar_select %p33, 0, %s32
    %s35 = smul.u32 %s23, 2
    %s36 = smul.u32 %s30, 2
    %s37 = ssub.s32 %s22, %s34
    %s38 = ssub.s32 %s35, %s36
    %s39 = sor.u32 %s37, %s38
    %p40 = scmp.eq.s32.totalorder %s39, 0
    %s42 = sadd.s32 %s41, 1
    %s43 = scalar_select %p40, %s41, %s42
    %p46 = pneg %p40
    %p47 = scmp.eq.s32.totalorder %s15, 7
    %p48 = por %p46, %p47
    %p49 = scmp.ne.s32.totalorder %s41, %s44
    %p50 = scmp.eq.s32.totalorder %s15, 0
    %p51 = por %p49, %p50
    %p52 = scmp.ne.s32.totalorder %s41, %s44
    %p53 = scmp.eq.s32.totalorder %s20, 7
    %p54 = por %p52, %p53
    %p55 = scmp.ne.s32.totalorder %s44, %s45
    %p56 = scmp.eq.s32.totalorder %s20, 0
    %p57 = por %p55, %p56
    %p58 = scmp.ne.s32.totalorder %s44, %s45
    %p59 = scmp.eq.s32.totalorder %s21, 7
    %p60 = por %p58, %p59
    %p62 = scmp.ne.s32.totalorder %s45, %s61
    %p63 = scmp.eq.s32.totalorder %s21, 0
    %p64 = por %p62, %p63
    %s65 = smul.u32 %s23, 2
    %s66 = sadd.s32 %s65, 1
    %s67 = smul.u32 %s30, 2
    %s68 = sadd.s32 %s67, 1
    %s69 = ssub.s32 %s22, %s34
    %s70 = ssub.s32 %s66, %s68
    %s71 = sor.u32 %s69, %s70
    %p72 = scmp.eq.s32.totalorder %s71, 0
    %s74 = sadd.s32 %s73, 1
    %s75 = scalar_select %p72, %s73, %s74
    %p78 = pneg %p72
    %p79 = scmp.eq.s32.totalorder %s15, 7
    %p80 = por %p78, %p79
    %p81 = scmp.ne.s32.totalorder %s73, %s76
    %p82 = scmp.eq.s32.totalorder %s15, 0
    %p83 = por %p81, %p82
    %p84 = scmp.ne.s32.totalorder %s73, %s76
    %p85 = scmp.eq.s32.totalorder %s20, 7
    %p86 = por %p84, %p85
    %p87 = scmp.ne.s32.totalorder %s76, %s77
    %p88 = scmp.eq.s32.totalorder %s20, 0
    %p89 = por %p87, %p88
    %p90 = scmp.ne.s32.totalorder %s76, %s77
    %p91 = scmp.eq.s32.totalorder %s21, 7
    %p92 = por %p90, %p91
    %p94 = scmp.ne.s32.totalorder %s77, %s93
    %p95 = scmp.eq.s32.totalorder %s21, 0
    %p96 = por %p94, %p95
    %s97 = smul.u32 %s23, 2
    %s98 = sadd.s32 %s97, 2
    %s99 = smul.u32 %s30, 2
    %s100 = sadd.s32 %s99, 2
    %s101 = ssub.s32 %s22, %s34
    %s102 = ssub.s32 %s98, %s100
    %s103 = sor.u32 %s101, %s102
    %p104 = scmp.eq.s32.totalorder %s103, 0
    %s106 = sadd.s32 %s105, 1
    %s107 = scalar_select %p104, %s105, %s106
    %p110 = pneg %p104
    %p111 = scmp.eq.s32.totalorder %s15, 7
    %p112 = por %p110, %p111
    %p113 = scmp.ne.s32.totalorder %s105, %s108
    %p114 = scmp.eq.s32.totalorder %s15, 0
    %p115 = por %p113, %p114
    %p116 = scmp.ne.s32.totalorder %s105, %s108
    %p117 = scmp.eq.s32.totalorder %s20, 7
    %p118 = por %p116, %p117
    %p119 = scmp.ne.s32.totalorder %s108, %s109
    %p120 = scmp.eq.s32.totalorder %s20, 0
    %p121 = por %p119, %p120
    %p122 = scmp.ne.s32.totalorder %s108, %s109
    %p123 = scmp.eq.s32.totalorder %s21, 7
    %p124 = por %p122, %p123
    %p126 = scmp.ne.s32.totalorder %s109, %s125
    %p127 = scmp.eq.s32.totalorder %s21, 0
    %p128 = por %p126, %p127
    %s129 = smul.u32 %s23, 2
    %s130 = smul.u32 %s30, 2
    %s131 = ssub.s32 %s22, %s34
    %s132 = ssub.s32 %s129, %s130
    %s133 = sor.u32 %s131, %s132
    %p134 = scmp.eq.s32.totalorder %s133, 0
    %s136 = sadd.s32 %s135, 1
    %s137 = scalar_select %p134, %s135, %s136
    %p140 = pneg %p134
    %p141 = scmp.eq.s32.totalorder %s15, 7
    %p142 = por %p140, %p141
    %p143 = scmp.ne.s32.totalorder %s135, %s138
    %p144 = scmp.eq.s32.totalorder %s15, 0
    %p145 = por %p143, %p144
    %p146 = scmp.ne.s32.totalorder %s135, %s138
    %p147 = scmp.eq.s32.totalorder %s20, 7
    %p148 = por %p146, %p147
    %p149 = scmp.ne.s32.totalorder %s138, %s139
    %p150 = scmp.eq.s32.totalorder %s20, 0
    %p151 = por %p149, %p150
    %p152 = scmp.ne.s32.totalorder %s138, %s139
    %p153 = scmp.eq.s32.totalorder %s21, 7
    %p154 = por %p152, %p153
    %p156 = scmp.ne.s32.totalorder %s139, %s155
    %p157 = scmp.eq.s32.totalorder %s21, 0
    %p158 = por %p156, %p157
    %s159 = smul.u32 %s23, 2
    %s160 = sadd.s32 %s159, 1
    %s161 = smul.u32 %s30, 2
    %s162 = sadd.s32 %s161, 1
    %s163 = ssub.s32 %s22, %s34
    %s164 = ssub.s32 %s160, %s162
    %s165 = sor.u32 %s163, %s164
    %p166 = scmp.eq.s32.totalorder %s165, 0
    %s168 = sadd.s32 %s167, 1
    %s169 = scalar_select %p166, %s167, %s168
    %p172 = pneg %p166
    %p173 = scmp.eq.s32.totalorder %s15, 7
    %p174 = por %p172, %p173
    %p175 = scmp.ne.s32.totalorder %s167, %s170
    %p176 = scmp.eq.s32.totalorder %s15, 0
    %p177 = por %p175, %p176
    %p178 = scmp.ne.s32.totalorder %s167, %s170
    %p179 = scmp.eq.s32.totalorder %s20, 7
    %p180 = por %p178, %p179
    %p181 = scmp.ne.s32.totalorder %s170, %s171
    %p182 = scmp.eq.s32.totalorder %s20, 0
    %p183 = por %p181, %p182
    %p184 = scmp.ne.s32.totalorder %s170, %s171
    %p185 = scmp.eq.s32.totalorder %s21, 7
    %p186 = por %p184, %p185
    %p188 = scmp.ne.s32.totalorder %s171, %s187
    %p189 = scmp.eq.s32.totalorder %s21, 0
    %p190 = por %p188, %p189
    %s191 = smul.u32 %s23, 2
    %s192 = sadd.s32 %s191, 2
    %s193 = smul.u32 %s30, 2
    %s194 = sadd.s32 %s193, 2
    %s195 = ssub.s32 %s22, %s34
    %s196 = ssub.s32 %s192, %s194
    %s197 = sor.u32 %s195, %s196
    %p198 = scmp.eq.s32.totalorder %s197, 0
    %s200 = sadd.s32 %s199, 1
    %s201 = scalar_select %p198, %s199, %s200
    %p204 = pneg %p198
    %p205 = scmp.eq.s32.totalorder %s15, 7
    %p206 = por %p204, %p205
    %p207 = scmp.ne.s32.totalorder %s199, %s202
    %p208 = scmp.eq.s32.totalorder %s15, 0
    %p209 = por %p207, %p208
    %p210 = scmp.ne.s32.totalorder %s199, %s202
    %p211 = scmp.eq.s32.totalorder %s20, 7
    %p212 = por %p210, %p211
    %p213 = scmp.ne.s32.totalorder %s202, %s203
    %p214 = scmp.eq.s32.totalorder %s20, 0
    %p215 = por %p213, %p214
    %p216 = scmp.ne.s32.totalorder %s202, %s203
    %p217 = scmp.eq.s32.totalorder %s21, 7
    %p218 = por %p216, %p217
    %p220 = scmp.ne.s32.totalorder %s203, %s219
    %p221 = scmp.eq.s32.totalorder %s21, 0
    %p222 = por %p220, %p221
    %s223 = smul.u32 %s23, 2
    %s224 = smul.u32 %s30, 2
    %s225 = ssub.s32 %s22, %s34
    %s226 = ssub.s32 %s223, %s224
    %s227 = sor.u32 %s225, %s226
    %p228 = scmp.eq.s32.totalorder %s227, 0
    %s230 = sadd.s32 %s229, 1
    %s231 = scalar_select %p228, %s229, %s230
    %p234 = pneg %p228
    %p235 = scmp.eq.s32.totalorder %s15, 7
    %p236 = por %p234, %p235
    %p237 = scmp.ne.s32.totalorder %s229, %s232
    %p238 = scmp.eq.s32.totalorder %s15, 0
    %p239 = por %p237, %p238
    %p240 = scmp.ne.s32.totalorder %s229, %s232
    %p241 = scmp.eq.s32.totalorder %s20, 7
    %p242 = por %p240, %p241
    %p243 = scmp.ne.s32.totalorder %s232, %s233
    %p244 = scmp.eq.s32.totalorder %s20, 0
    %p245 = por %p243, %p244
    %p246 = scmp.ne.s32.totalorder %s232, %s233
    %p247 = scmp.eq.s32.totalorder %s21, 7
    %p248 = por %p246, %p247
    %p250 = scmp.ne.s32.totalorder %s233, %s249
    %p251 = scmp.eq.s32.totalorder %s21, 0
    %p252 = por %p250, %p251
    %s253 = smul.u32 %s23, 2
    %s254 = sadd.s32 %s253, 1
    %s255 = smul.u32 %s30, 2
    %s256 = sadd.s32 %s255, 1
    %s257 = ssub.s32 %s22, %s34
    %s258 = ssub.s32 %s254, %s256
    %s259 = sor.u32 %s257, %s258
    %p260 = scmp.eq.s32.totalorder %s259, 0
    %s262 = sadd.s32 %s261, 1
    %s263 = scalar_select %p260, %s261, %s262
    %p266 = pneg %p260
    %p267 = scmp.eq.s32.totalorder %s15, 7
    %p268 = por %p266, %p267
    %p269 = scmp.ne.s32.totalorder %s261, %s264
    %p270 = scmp.eq.s32.totalorder %s15, 0
    %p271 = por %p269, %p270
    %p272 = scmp.ne.s32.totalorder %s261, %s264
    %p273 = scmp.eq.s32.totalorder %s20, 7
    %p274 = por %p272, %p273
    %p275 = scmp.ne.s32.totalorder %s264, %s265
    %p276 = scmp.eq.s32.totalorder %s20, 0
    %p277 = por %p275, %p276
    %p278 = scmp.ne.s32.totalorder %s264, %s265
    %p279 = scmp.eq.s32.totalorder %s21, 7
    %p280 = por %p278, %p279
    %p282 = scmp.ne.s32.totalorder %s265, %s281
    %p283 = scmp.eq.s32.totalorder %s21, 0
    %p284 = por %p282, %p283
    %s285 = smul.u32 %s23, 2
    %s286 = sadd.s32 %s285, 2
    %s287 = smul.u32 %s30, 2
    %s288 = sadd.s32 %s287, 2
    %s289 = ssub.s32 %s22, %s34
    %s290 = ssub.s32 %s286, %s288
    %s291 = sor.u32 %s289, %s290
    %p292 = scmp.eq.s32.totalorder %s291, 0
    %s294 = sadd.s32 %s293, 1
    %s295 = scalar_select %p292, %s293, %s294
    %p298 = pneg %p292
    %p299 = scmp.eq.s32.totalorder %s15, 7
    %p300 = por %p298, %p299
    %p301 = scmp.ne.s32.totalorder %s293, %s296
    %p302 = scmp.eq.s32.totalorder %s15, 0
    %p303 = por %p301, %p302
    %p304 = scmp.ne.s32.totalorder %s293, %s296
    %p305 = scmp.eq.s32.totalorder %s20, 7
    %p306 = por %p304, %p305
    %p307 = scmp.ne.s32.totalorder %s296, %s297
    %p308 = scmp.eq.s32.totalorder %s20, 0
    %p309 = por %p307, %p308
    %p310 = scmp.ne.s32.totalorder %s296, %s297
    %p311 = scmp.eq.s32.totalorder %s21, 7
    %p312 = por %p310, %p311
    %p314 = scmp.ne.s32.totalorder %s297, %s313
    %p315 = scmp.eq.s32.totalorder %s21, 0
    %p316 = por %p314, %p315
    %s317 = ssub.s32 %s22, %s34
    %s318 = ssub.s32 %s23, %s30
    %s319 = sor.u32 %s317, %s318
    %p320 = scmp.eq.s32.totalorder %s319, 0
    %s322 = sadd.s32 %s321, 1
    %s323 = scalar_select %p320, %s321, %s322
    %p326 = pneg %p320
    %p327 = scmp.eq.s32.totalorder %s15, 7
    %p328 = por %p326, %p327
    %p329 = scmp.ne.s32.totalorder %s321, %s324
    %p330 = scmp.eq.s32.totalorder %s15, 0
    %p331 = por %p329, %p330
    %p332 = scmp.ne.s32.totalorder %s321, %s324
    %p333 = scmp.eq.s32.totalorder %s20, 7
    %p334 = por %p332, %p333
    %p335 = scmp.ne.s32.totalorder %s324, %s325
    %p336 = scmp.eq.s32.totalorder %s20, 0
    %p337 = por %p335, %p336
    %p338 = scmp.ne.s32.totalorder %s324, %s325
    %p339 = scmp.eq.s32.totalorder %s21, 7
    %p340 = por %p338, %p339
    %p342 = scmp.ne.s32.totalorder %s325, %s341
    %p343 = scmp.eq.s32.totalorder %s21, 0
    %p344 = por %p342, %p343
    %p345 = scmp.le.s32.totalorder 1, %s15
    %p346 = scmp.lt.s32.totalorder %s15, 9
    %p347 = pnand %p345, %p346
    %p348 = pneg %p347
    // Predicated region
    $region9: #{_lambda_.18} parent=5 // pred_check
      _
    $region10: #{_lambda_.18} parent=5 // pred_check_branch
      %350 = sbr.rel (%p347) target = $region12
    $region11: #{_lambda_.18} parent=5 // pred_region
      %s351 = ssub.s32 %s15, 1
    $region12: #{_lambda_.18} parent=5 // pred_fallthru
      _
    %p352 = scmp.lt.s32.totalorder %s15, 8
    // Predicated region
    $region13: #{_lambda_.18} parent=5 // pred_check
      %p353 = pneg %p352
    $region14: #{_lambda_.18} parent=5 // pred_check_branch
      %355 = sbr.rel (%p353) target = $region16
    $region15: #{_lambda_.18} parent=5 // pred_region
      // Predicated region
      $region17: #{_lambda_.18} parent=15 // pred_check
        %p356 = pneg %p51
      $region18: #{_lambda_.18} parent=15 // pred_check_branch
        %358 = sbr.rel (%p356) target = $region20
      $region19: #{_lambda_.18} parent=15 // pred_region
        %s359 = smul.u32 %s23, 2
        %p360 = scmp.lt.s32.totalorder %s22, 1
        %s361 = scalar_select %p360, %s22, 1
        %p362 = scmp.lt.s32.totalorder %s359, 9
        %s363 = scalar_select %p362, %s359, 9
        %s364 = smul.addr %s361, 10
        %s365 = sadd.s32 %s363, %s364
        %s366 = smul.addr %s365, 2
        %s367 = scalar_lea.vmem %s0, %s366
        %s368 = smul.u32 %s23, 2
      $region20: #{_lambda_.18} parent=15 // pred_fallthru
        _
      // Predicated region
      $region21: #{_lambda_.18} parent=15 // pred_check
        %p369 = pneg %p83
      $region22: #{_lambda_.18} parent=15 // pred_check_branch
        %371 = sbr.rel (%p369) target = $region24
      $region23: #{_lambda_.18} parent=15 // pred_region
        %s372 = smul.u32 %s23, 2
        %s373 = sadd.s32 %s372, 1
        %p374 = scmp.lt.s32.totalorder %s22, 1
        %s375 = scalar_select %p374, %s22, 1
        %p376 = scmp.lt.s32.totalorder %s373, 9
        %s377 = scalar_select %p376, %s373, 9
        %s378 = smul.addr %s375, 10
        %s379 = sadd.s32 %s377, %s378
        %s380 = smul.addr %s379, 2
        %s381 = scalar_lea.vmem %s1, %s380
        %s382 = smul.u32 %s23, 2
        %s383 = sadd.s32 %s382, 1
      $region24: #{_lambda_.18} parent=15 // pred_fallthru
        _
      // Predicated region
      $region25: #{_lambda_.18} parent=15 // pred_check
        %p384 = pneg %p115
      $region26: #{_lambda_.18} parent=15 // pred_check_branch
        %386 = sbr.rel (%p384) target = $region28
      $region27: #{_lambda_.18} parent=15 // pred_region
        %s387 = smul.u32 %s23, 2
        %s388 = sadd.s32 %s387, 2
        %p389 = scmp.lt.s32.totalorder %s22, 1
        %s390 = scalar_select %p389, %s22, 1
        %p391 = scmp.lt.s32.totalorder %s388, 9
        %s392 = scalar_select %p391, %s388, 9
        %s393 = smul.addr %s390, 10
        %s394 = sadd.s32 %s392, %s393
        %s395 = smul.addr %s394, 2
        %s396 = scalar_lea.vmem %s2, %s395
        %s397 = smul.u32 %s23, 2
        %s398 = sadd.s32 %s397, 2
      $region28: #{_lambda_.18} parent=15 // pred_fallthru
        _
      // Predicated region
      $region29: #{_lambda_.18} parent=15 // pred_check
        %p399 = pneg %p145
      $region30: #{_lambda_.18} parent=15 // pred_check_branch
        %401 = sbr.rel (%p399) target = $region32
      $region31: #{_lambda_.18} parent=15 // pred_region
        %s402 = smul.u32 %s23, 2
        %p403 = scmp.lt.s32.totalorder %s22, 1
        %s404 = scalar_select %p403, %s22, 1
        %p405 = scmp.lt.s32.totalorder %s402, 9
        %s406 = scalar_select %p405, %s402, 9
        %s407 = smul.addr %s404, 10
        %s408 = sadd.s32 %s406, %s407
        %s409 = smul.addr %s408, 2
        %s410 = scalar_lea.vmem %s3, %s409
        %s411 = smul.u32 %s23, 2
      $region32: #{_lambda_.18} parent=15 // pred_fallthru
        _
      // Predicated region
      $region33: #{_lambda_.18} parent=15 // pred_check
        %p412 = pneg %p177
      $region34: #{_lambda_.18} parent=15 // pred_check_branch
        %414 = sbr.rel (%p412) target = $region36
      $region35: #{_lambda_.18} parent=15 // pred_region
        %s415 = smul.u32 %s23, 2
        %s416 = sadd.s32 %s415, 1
        %p417 = scmp.lt.s32.totalorder %s22, 1
        %s418 = scalar_select %p417, %s22, 1
        %p419 = scmp.lt.s32.totalorder %s416, 9
        %s420 = scalar_select %p419, %s416, 9
        %s421 = smul.addr %s418, 10
        %s422 = sadd.s32 %s420, %s421
        %s423 = smul.addr %s422, 2
        %s424 = scalar_lea.vmem %s4, %s423
        %s425 = smul.u32 %s23, 2
        %s426 = sadd.s32 %s425, 1
      $region36: #{_lambda_.18} parent=15 // pred_fallthru
        _
      // Predicated region
      $region37: #{_lambda_.18} parent=15 // pred_check
        %p427 = pneg %p209
      $region38: #{_lambda_.18} parent=15 // pred_check_branch
        %429 = sbr.rel (%p427) target = $region40
      $region39: #{_lambda_.18} parent=15 // pred_region
        %s430 = smul.u32 %s23, 2
        %s431 = sadd.s32 %s430, 2
        %p432 = scmp.lt.s32.totalorder %s22, 1
        %s433 = scalar_select %p432, %s22, 1
        %p434 = scmp.lt.s32.totalorder %s431, 9
        %s435 = scalar_select %p434, %s431, 9
        %s436 = smul.addr %s433, 10
        %s437 = sadd.s32 %s435, %s436
        %s438 = smul.addr %s437, 2
        %s439 = scalar_lea.vmem %s5, %s438
        %s440 = smul.u32 %s23, 2
        %s441 = sadd.s32 %s440, 2
      $region40: #{_lambda_.18} parent=15 // pred_fallthru
        _
      // Predicated region
      $region41: #{_lambda_.18} parent=15 // pred_check
        %p442 = pneg %p239
      $region42: #{_lambda_.18} parent=15 // pred_check_branch
        %444 = sbr.rel (%p442) target = $region44
      $region43: #{_lambda_.18} parent=15 // pred_region
        %s445 = smul.u32 %s23, 2
        %p446 = scmp.lt.s32.totalorder %s22, 1
        %s447 = scalar_select %p446, %s22, 1
        %p448 = scmp.lt.s32.totalorder %s445, 9
        %s449 = scalar_select %p448, %s445, 9
        %s450 = smul.addr %s447, 10
        %s451 = sadd.s32 %s449, %s450
        %s452 = smul.addr %s451, 2
        %s453 = scalar_lea.vmem %s6, %s452
        %s454 = smul.u32 %s23, 2
      $region44: #{_lambda_.18} parent=15 // pred_fallthru
        _
      // Predicated region
      $region45: #{_lambda_.18} parent=15 // pred_check
        %p455 = pneg %p271
      $region46: #{_lambda_.18} parent=15 // pred_check_branch
        %457 = sbr.rel (%p455) target = $region48
      $region47: #{_lambda_.18} parent=15 // pred_region
        %s458 = smul.u32 %s23, 2
        %s459 = sadd.s32 %s458, 1
        %p460 = scmp.lt.s32.totalorder %s22, 1
        %s461 = scalar_select %p460, %s22, 1
        %p462 = scmp.lt.s32.totalorder %s459, 9
        %s463 = scalar_select %p462, %s459, 9
        %s464 = smul.addr %s461, 10
        %s465 = sadd.s32 %s463, %s464
        %s466 = smul.addr %s465, 2
        %s467 = scalar_lea.vmem %s7, %s466
        %s468 = smul.u32 %s23, 2
        %s469 = sadd.s32 %s468, 1
      $region48: #{_lambda_.18} parent=15 // pred_fallthru
        _
      // Predicated region
      $region49: #{_lambda_.18} parent=15 // pred_check
        %p470 = pneg %p303
      $region50: #{_lambda_.18} parent=15 // pred_check_branch
        %472 = sbr.rel (%p470) target = $region52
      $region51: #{_lambda_.18} parent=15 // pred_region
        %s473 = smul.u32 %s23, 2
        %s474 = sadd.s32 %s473, 2
        %p475 = scmp.lt.s32.totalorder %s22, 1
        %s476 = scalar_select %p475, %s22, 1
        %p477 = scmp.lt.s32.totalorder %s474, 9
        %s478 = scalar_select %p477, %s474, 9
        %s479 = smul.addr %s476, 10
        %s480 = sadd.s32 %s478, %s479
        %s481 = smul.addr %s480, 2
        %s482 = scalar_lea.vmem %s8, %s481
        %s483 = smul.u32 %s23, 2
        %s484 = sadd.s32 %s483, 2
      $region52: #{_lambda_.18} parent=15 // pred_fallthru
        _
    $region16: #{_lambda_.18} parent=5 // pred_fallthru
      _
    %p485 = scmp.le.s32.totalorder 1, %s15
    %p486 = scmp.lt.s32.totalorder %s15, 9
    %p487 = pnand %p485, %p486
    %p488 = pneg %p487
    // Predicated region
    $region53: #{_lambda_.18} parent=5 // pred_check
      _
    $region54: #{_lambda_.18} parent=5 // pred_check_branch
      %490 = sbr.rel (%p487) target = $region56
    $region55: #{_lambda_.18} parent=5 // pred_region
      %s491 = ssub.s32 %s15, 1
      %s492 = smul.u32 %s25, 2
      %p493 = scmp.lt.s32.totalorder %s24, 1
      %s494 = scalar_select %p493, %s24, 1
      %p495 = scmp.lt.s32.totalorder %s492, 9
      %s496 = scalar_select %p495, %s492, 9
      %s497 = smul.addr %s494, 10
      %s498 = sadd.s32 %s496, %s497
      %s499 = smul.addr %s498, 2
      %s500 = scalar_lea.vmem %s0, %s499
      %p501 = pneg %p57
      %p502 = pneg %p54
      %s503 = smul.u32 %s25, 2
      %s504 = sadd.s32 %s503, 1
      %p505 = scmp.lt.s32.totalorder %s24, 1
      %s506 = scalar_select %p505, %s24, 1
      %p507 = scmp.lt.s32.totalorder %s504, 9
      %s508 = scalar_select %p507, %s504, 9
      %s509 = smul.addr %s506, 10
      %s510 = sadd.s32 %s508, %s509
      %s511 = smul.addr %s510, 2
      %s512 = scalar_lea.vmem %s1, %s511
      %p513 = pneg %p89
      %p514 = pneg %p86
      %s515 = smul.u32 %s25, 2
      %s516 = sadd.s32 %s515, 2
      %p517 = scmp.lt.s32.totalorder %s24, 1
      %s518 = scalar_select %p517, %s24, 1
      %p519 = scmp.lt.s32.totalorder %s516, 9
      %s520 = scalar_select %p519, %s516, 9
      %s521 = smul.addr %s518, 10
      %s522 = sadd.s32 %s520, %s521
      %s523 = smul.addr %s522, 2
      %s524 = scalar_lea.vmem %s2, %s523
      %p525 = pneg %p121
      %p526 = pneg %p118
      %s527 = smul.u32 %s25, 2
      %p528 = scmp.lt.s32.totalorder %s24, 1
      %s529 = scalar_select %p528, %s24, 1
      %p530 = scmp.lt.s32.totalorder %s527, 9
      %s531 = scalar_select %p530, %s527, 9
      %s532 = smul.addr %s529, 10
      %s533 = sadd.s32 %s531, %s532
      %s534 = smul.addr %s533, 2
      %s535 = scalar_lea.vmem %s3, %s534
      %p536 = pneg %p151
      %p537 = pneg %p148
      %s538 = smul.u32 %s25, 2
      %s539 = sadd.s32 %s538, 1
      %p540 = scmp.lt.s32.totalorder %s24, 1
      %s541 = scalar_select %p540, %s24, 1
      %p542 = scmp.lt.s32.totalorder %s539, 9
      %s543 = scalar_select %p542, %s539, 9
      %s544 = smul.addr %s541, 10
      %s545 = sadd.s32 %s543, %s544
      %s546 = smul.addr %s545, 2
      %s547 = scalar_lea.vmem %s4, %s546
      %p548 = pneg %p183
      %p549 = pneg %p180
      %s550 = smul.u32 %s25, 2
      %s551 = sadd.s32 %s550, 2
      %p552 = scmp.lt.s32.totalorder %s24, 1
      %s553 = scalar_select %p552, %s24, 1
      %p554 = scmp.lt.s32.totalorder %s551, 9
      %s555 = scalar_select %p554, %s551, 9
      %s556 = smul.addr %s553, 10
      %s557 = sadd.s32 %s555, %s556
      %s558 = smul.addr %s557, 2
      %s559 = scalar_lea.vmem %s5, %s558
      %p560 = pneg %p215
      %p561 = pneg %p212
      %s562 = smul.u32 %s25, 2
      %p563 = scmp.lt.s32.totalorder %s24, 1
      %s564 = scalar_select %p563, %s24, 1
      %p565 = scmp.lt.s32.totalorder %s562, 9
      %s566 = scalar_select %p565, %s562, 9
      %s567 = smul.addr %s564, 10
      %s568 = sadd.s32 %s566, %s567
      %s569 = smul.addr %s568, 2
      %s570 = scalar_lea.vmem %s6, %s569
      %p571 = pneg %p245
      %p572 = pneg %p242
      %s573 = smul.u32 %s25, 2
      %s574 = sadd.s32 %s573, 1
      %p575 = scmp.lt.s32.totalorder %s24, 1
      %s576 = scalar_select %p575, %s24, 1
      %p577 = scmp.lt.s32.totalorder %s574, 9
      %s578 = scalar_select %p577, %s574, 9
      %s579 = smul.addr %s576, 10
      %s580 = sadd.s32 %s578, %s579
      %s581 = smul.addr %s580, 2
      %s582 = scalar_lea.vmem %s7, %s581
      %p583 = pneg %p277
      %p584 = pneg %p274
      %s585 = smul.u32 %s25, 2
      %s586 = sadd.s32 %s585, 2
      %p587 = scmp.lt.s32.totalorder %s24, 1
      %s588 = scalar_select %p587, %s24, 1
      %p589 = scmp.lt.s32.totalorder %s586, 9
      %s590 = scalar_select %p589, %s586, 9
      %s591 = smul.addr %s588, 10
      %s592 = sadd.s32 %s590, %s591
      %s593 = smul.addr %s592, 2
      %s594 = scalar_lea.vmem %s8, %s593
      %p595 = pneg %p309
      %p596 = pneg %p306
      %p597 = pneg %p337
      %p598 = pneg %p334
      %p599 = scmp.lt.s32.totalorder %s24, 1
      %s600 = scalar_select %p599, %s24, 1
      %p601 = scmp.lt.s32.totalorder %s25, 3
      %s602 = scalar_select %p601, %s25, 3
      %s603 = smul.addr %s600, 4
      %s604 = sadd.s32 %s602, %s603
      %s605 = smul.addr %s604, 2
      %s606 = scalar_lea.vmem %s9, %s605
      %s607 = smul.u32 %s25, 2
      %p608 = scmp.lt.s32.totalorder %s24, 1
      %s609 = scalar_select %p608, %s24, 1
      %p610 = scmp.lt.s32.totalorder %s607, 9
      %s611 = scalar_select %p610, %s607, 9
      %s612 = smul.addr %s609, 10
      %s613 = sadd.s32 %s611, %s612
      %s614 = smul.addr %s613, 2
      %s615 = scalar_lea.vmem %s0, %s614
      %s616 = smul.u32 %s25, 2
      %s617 = smul.u32 %s25, 2
      %s618 = sadd.s32 %s617, 1
      %p619 = scmp.lt.s32.totalorder %s24, 1
      %s620 = scalar_select %p619, %s24, 1
      %p621 = scmp.lt.s32.totalorder %s618, 9
      %s622 = scalar_select %p621, %s618, 9
      %s623 = smul.addr %s620, 10
      %s624 = sadd.s32 %s622, %s623
      %s625 = smul.addr %s624, 2
      %s626 = scalar_lea.vmem %s1, %s625
      %s627 = smul.u32 %s25, 2
      %s628 = sadd.s32 %s627, 1
      %s629 = smul.u32 %s25, 2
      %s630 = sadd.s32 %s629, 2
      %p631 = scmp.lt.s32.totalorder %s24, 1
      %s632 = scalar_select %p631, %s24, 1
      %p633 = scmp.lt.s32.totalorder %s630, 9
      %s634 = scalar_select %p633, %s630, 9
      %s635 = smul.addr %s632, 10
      %s636 = sadd.s32 %s634, %s635
      %s637 = smul.addr %s636, 2
      %s638 = scalar_lea.vmem %s2, %s637
      %s639 = smul.u32 %s25, 2
      %s640 = sadd.s32 %s639, 2
      %s641 = smul.u32 %s25, 2
      %p642 = scmp.lt.s32.totalorder %s24, 1
      %s643 = scalar_select %p642, %s24, 1
      %p644 = scmp.lt.s32.totalorder %s641, 9
      %s645 = scalar_select %p644, %s641, 9
      %s646 = smul.addr %s643, 10
      %s647 = sadd.s32 %s645, %s646
      %s648 = smul.addr %s647, 2
      %s649 = scalar_lea.vmem %s3, %s648
      %s650 = smul.u32 %s25, 2
      %s651 = smul.u32 %s25, 2
      %s652 = sadd.s32 %s651, 1
      %p653 = scmp.lt.s32.totalorder %s24, 1
      %s654 = scalar_select %p653, %s24, 1
      %p655 = scmp.lt.s32.totalorder %s652, 9
      %s656 = scalar_select %p655, %s652, 9
      %s657 = smul.addr %s654, 10
      %s658 = sadd.s32 %s656, %s657
      %s659 = smul.addr %s658, 2
      %s660 = scalar_lea.vmem %s4, %s659
      %s661 = smul.u32 %s25, 2
      %s662 = sadd.s32 %s661, 1
      %s663 = smul.u32 %s25, 2
      %s664 = sadd.s32 %s663, 2
      %p665 = scmp.lt.s32.totalorder %s24, 1
      %s666 = scalar_select %p665, %s24, 1
      %p667 = scmp.lt.s32.totalorder %s664, 9
      %s668 = scalar_select %p667, %s664, 9
      %s669 = smul.addr %s666, 10
      %s670 = sadd.s32 %s668, %s669
      %s671 = smul.addr %s670, 2
      %s672 = scalar_lea.vmem %s5, %s671
      %s673 = smul.u32 %s25, 2
      %s674 = sadd.s32 %s673, 2
      %s675 = smul.u32 %s25, 2
      %p676 = scmp.lt.s32.totalorder %s24, 1
      %s677 = scalar_select %p676, %s24, 1
      %p678 = scmp.lt.s32.totalorder %s675, 9
      %s679 = scalar_select %p678, %s675, 9
      %s680 = smul.addr %s677, 10
      %s681 = sadd.s32 %s679, %s680
      %s682 = smul.addr %s681, 2
      %s683 = scalar_lea.vmem %s6, %s682
      %s684 = smul.u32 %s25, 2
      %s685 = smul.u32 %s25, 2
      %s686 = sadd.s32 %s685, 1
      %p687 = scmp.lt.s32.totalorder %s24, 1
      %s688 = scalar_select %p687, %s24, 1
      %p689 = scmp.lt.s32.totalorder %s686, 9
      %s690 = scalar_select %p689, %s686, 9
      %s691 = smul.addr %s688, 10
      %s692 = sadd.s32 %s690, %s691
      %s693 = smul.addr %s692, 2
      %s694 = scalar_lea.vmem %s7, %s693
      %s695 = smul.u32 %s25, 2
      %s696 = sadd.s32 %s695, 1
      %s697 = smul.u32 %s25, 2
      %s698 = sadd.s32 %s697, 2
      %p699 = scmp.lt.s32.totalorder %s24, 1
      %s700 = scalar_select %p699, %s24, 1
      %p701 = scmp.lt.s32.totalorder %s698, 9
      %s702 = scalar_select %p701, %s698, 9
      %s703 = smul.addr %s700, 10
      %s704 = sadd.s32 %s702, %s703
      %s705 = smul.addr %s704, 2
      %s706 = scalar_lea.vmem %s8, %s705
      %s707 = smul.u32 %s25, 2
      %s708 = sadd.s32 %s707, 2
      %p709 = scmp.lt.s32.totalorder %s24, 1
      %s710 = scalar_select %p709, %s24, 1
      %p711 = scmp.lt.s32.totalorder %s25, 3
      %s712 = scalar_select %p711, %s25, 3
      %s713 = smul.addr %s710, 4
      %s714 = sadd.s32 %s712, %s713
      %s715 = smul.addr %s714, 2
      %s716 = scalar_lea.vmem %s9, %s715
      %v717 = vld [vmem:[%s615] sm:$0x3]
      %v718 = vld [vmem:[%s626] sm:$0x3]
      %v719 = vunpack.c.l.bf16 %v717
      %v720 = vunpack.c.l.bf16 %v718
      %v721 = vmax.f32 %v719, %v720
      %v722 = vpack.c.bf16 %v721, %v721
      %v723 = vld [vmem:[%s638] sm:$0x3]
      %v724 = vunpack.c.l.bf16 %v722
      %v725 = vunpack.c.l.bf16 %v723
      %v726 = vmax.f32 %v724, %v725
      %v727 = vpack.c.bf16 %v726, %v726
      %v728 = vld [vmem:[%s649] sm:$0x3]
      %v729 = vunpack.c.l.bf16 %v727
      %v730 = vunpack.c.l.bf16 %v728
      %v731 = vmax.f32 %v729, %v730
      %v732 = vpack.c.bf16 %v731, %v731
      %v733 = vld [vmem:[%s660] sm:$0x3]
      %v734 = vunpack.c.l.bf16 %v732
      %v735 = vunpack.c.l.bf16 %v733
      %v736 = vmax.f32 %v734, %v735
      %v737 = vpack.c.bf16 %v736, %v736
      %v738 = vld [vmem:[%s672] sm:$0x3]
      %v739 = vunpack.c.l.bf16 %v737
      %v740 = vunpack.c.l.bf16 %v738
      %v741 = vmax.f32 %v739, %v740
      %v742 = vpack.c.bf16 %v741, %v741
      %v743 = vld [vmem:[%s683] sm:$0x3]
      %v744 = vunpack.c.l.bf16 %v742
      %v745 = vunpack.c.l.bf16 %v743
      %v746 = vmax.f32 %v744, %v745
      %v747 = vpack.c.bf16 %v746, %v746
      %v748 = vld [vmem:[%s694] sm:$0x3]
      %v749 = vunpack.c.l.bf16 %v747
      %v750 = vunpack.c.l.bf16 %v748
      %v751 = vmax.f32 %v749, %v750
      %v752 = vpack.c.bf16 %v751, %v751
      %v753 = vld [vmem:[%s706] sm:$0x3]
      %v754 = vunpack.c.l.bf16 %v752
      %v755 = vunpack.c.l.bf16 %v753
      %v756 = vmax.f32 %v754, %v755
      %v757 = vpack.c.bf16 %v756, %v756
      %vm758 = vcmask 517120
      %759 = vst.msk [vmem:[%s716] sm:$0x3] %vm758, %v757
      %p760 = scmp.lt.s32.totalorder %s24, 1
      %s761 = scalar_select %p760, %s24, 1
      %p762 = scmp.lt.s32.totalorder %s25, 3
      %s763 = scalar_select %p762, %s25, 3
      %s764 = smul.addr %s761, 4
      %s765 = sadd.s32 %s763, %s764
      %s766 = smul.addr %s765, 2
      %s767 = scalar_lea.vmem %s9, %s766
      // Predicated region
      $region57: #{_lambda_.18} parent=55 // pred_check
        %p768 = pneg %p334
      $region58: #{_lambda_.18} parent=55 // pred_check_branch
        %770 = sbr.rel (%p768) target = $region60
      $region59: #{_lambda_.18} parent=55 // pred_region
        _
      $region60: #{_lambda_.18} parent=55 // pred_fallthru
        _
    $region56: #{_lambda_.18} parent=5 // pred_fallthru
      _
    %p771 = scmp.le.s32.totalorder 2, %s15
    // Predicated region
    $region61: #{_lambda_.18} parent=5 // pred_check
      %p772 = pneg %p771
    $region62: #{_lambda_.18} parent=5 // pred_check_branch
      %774 = sbr.rel (%p772) target = $region64
    $region63: #{_lambda_.18} parent=5 // pred_region
      %s775 = ssub.s32 %s15, 2
      // Predicated region
      $region65: #{_lambda_.18} parent=63 // pred_check
        %p776 = pneg %p340
      $region66: #{_lambda_.18} parent=63 // pred_check_branch
        %778 = sbr.rel (%p776) target = $region68
      $region67: #{_lambda_.18} parent=63 // pred_region
        %p779 = scmp.lt.s32.totalorder %s26, 1
        %s780 = scalar_select %p779, %s26, 1
        %p781 = scmp.lt.s32.totalorder %s27, 3
        %s782 = scalar_select %p781, %s27, 3
        %s783 = smul.addr %s780, 4
        %s784 = sadd.s32 %s782, %s783
        %s785 = smul.addr %s784, 2
        %s786 = scalar_lea.vmem %s9, %s785
      $region68: #{_lambda_.18} parent=63 // pred_fallthru
        _
    $region64: #{_lambda_.18} parent=5 // pred_fallthru
      _
  $region6: #{_lambda_.18} parent=0 // loop_footer
    %s19 = sadd.s32 1, %s15
  $region7: #{_lambda_.18} parent=0 // loop_footer_branch
    %14 = sbr.rel target = $region3
  $region8: #{_lambda_.18} parent=0 // loop_exit
    _

// kernel: _lambda_.19
$region0: #{_lambda_.19}
  #allocation0 [shape = 'u32[]', space=smem, size = 0x4, offset = 0x4, fixed_abs, tag = 'smem constant byte address 0x4 - core index']
  #allocation1 [shape = 'u32[72,128]{1,0:T(1,128)}', space=vmem, size = 0x9000, scoped, tag = 'internal scratch']
  %s0 = inlined_call_operand.vmem [shape: bf16[32,64], index: 0, kind: input, shape index: {}]
  %s1 = inlined_call_operand.vmem [shape: bf16[64,64], index: 1, kind: input, shape index: {}]
  %s2 = inlined_call_operand.vmem [shape: f32[1,64], index: 2, kind: input, shape index: {}]
  %s3 = inlined_call_operand.vmem [shape: f32[1,64], index: 3, kind: input, shape index: {}]
  %s4 = inlined_call_operand.vmem [shape: bf16[32,64], index: 4, kind: output, shape index: {}]
  %s5 = sld [smem:[#allocation0]]
  $region26: #{_lambda_.19} parent=0
    _
  %s7 = ssub.s32 1, %s5
  %s8 = scalar_select 0, %s7, %s5
  // Predicated region
  $region2: #{_lambda_.19} parent=0 // pred_check
    _
  $region3: #{_lambda_.19} parent=0 // pred_check_branch
    %10 = sbr.rel (0) target = $region5
  $region4: #{_lambda_.19} parent=0 // pred_region
    _
  $region5: #{_lambda_.19} parent=0 // pred_fallthru
    _
  // Predicated region
  $region6: #{_lambda_.19} parent=0 // pred_check
    _
  $region7: #{_lambda_.19} parent=0 // pred_check_branch
    %12 = sbr.rel (0) target = $region9
  $region8: #{_lambda_.19} parent=0 // pred_region
    _
  $region9: #{_lambda_.19} parent=0 // pred_fallthru
    _
  // Predicated region
  $region10: #{_lambda_.19} parent=0 // pred_check
    _
  $region11: #{_lambda_.19} parent=0 // pred_check_branch
    %14 = sbr.rel (0) target = $region13
  $region12: #{_lambda_.19} parent=0 // pred_region
    _
  $region13: #{_lambda_.19} parent=0 // pred_fallthru
    _
  // Predicated region
  $region14: #{_lambda_.19} parent=0 // pred_check
    _
  $region15: #{_lambda_.19} parent=0 // pred_check_branch
    %16 = sbr.rel (0) target = $region17
  $region16: #{_lambda_.19} parent=0 // pred_region
    _
  $region17: #{_lambda_.19} parent=0 // pred_fallthru
    _
  %v18 = vld [vmem:[%s0] sm:$0xf]
  %v19 = vld [vmem:[%s0 + $0x4] sm:$0xf]
  %v20 = vld [vmem:[%s0 + $0x8] sm:$0xf]
  %v21 = vld [vmem:[%s0 + $0xc] sm:$0xf]
  %v22 = vld [vmem:[%s1] sm:$0xf]
  %v23 = vld [vmem:[%s1 + $0x4] sm:$0xf]
  %v24 = vld [vmem:[%s1 + $0x8] sm:$0xf]
  %v25 = vld [vmem:[%s1 + $0xc] sm:$0xf]
  %v26 = vld [vmem:[%s1 + $0x10] sm:$0xf]
  %v27 = vld [vmem:[%s1 + $0x14] sm:$0xf]
  %v28 = vld [vmem:[%s1 + $0x18] sm:$0xf]
  %v29 = vld [vmem:[%s1 + $0x1c] sm:$0xf]
  %v34 = vunpack.c.l.b16 %v18
  %v35 = vunpack.c.l.b16 %v19
  %v36 = vunpack.c.l.b16 %v20
  %v37 = vunpack.c.l.b16 %v21
  %v38 = vpack.c.b16 %v35, %v34
  %v39 = vpack.c.b16 %v37, %v36
  %v48 = vunpack.c.l.b16 %v22
  %v49 = vunpack.c.l.b16 %v23
  %v50 = vunpack.c.l.b16 %v24
  %v51 = vunpack.c.l.b16 %v25
  %v52 = vunpack.c.l.b16 %v26
  %v53 = vunpack.c.l.b16 %v27
  %v54 = vunpack.c.l.b16 %v28
  %v55 = vunpack.c.l.b16 %v29
  %v56 = vpack.c.b16 %v49, %v48
  %v57 = vpack.c.b16 %v51, %v50
  %v58 = vpack.c.b16 %v53, %v52
  %v59 = vpack.c.b16 %v55, %v54
  %vm64 = vcmask 523264
  %v66 = vsel %vm64, %v38, 0
  %v69 = vsel %vm64, %v39, 0
  %71 = vmatpush.bf16.msra.mxu0 0
  %72 = vmatpush.bf16.msra.mxu0 0
  %73 = vmatpush.bf16.msra.mxu0 0
  %74 = vmatpush.bf16.msra.mxu0 0
  %75 = vmatpush.bf16.msra.mxu0 %v59
  %76 = vmatpush.bf16.msra.mxu0 %v58
  %77 = vmatpush.bf16.msra.mxu0 %v57
  %78 = vmatpush.bf16.msra.mxu0 %v56
  %79 = vmatmul.bf16.gmra.mxu0 %v66
  %v80 = vpop.f32.mrf.mxu0
  %v81 = vadd.f32 0.0, %v80
  %v82 = vpop.f32.mrf.mxu0
  %v83 = vadd.f32 0.0, %v82
  %84 = vmatmul.bf16.gmra.mxu0 %v69
  %v85 = vpop.f32.mrf.mxu0
  %v86 = vadd.f32 0.0, %v85
  %v87 = vpop.f32.mrf.mxu0
  %v88 = vadd.f32 0.0, %v87
  %89 = vdwg.mxu0
  %v90 = vld [vmem:[%s2] sm:$0x1]
  %v92 = vperm.slane %v90, 0
  %v94 = vmul.f32 %v81, %v92
  %v95 = vmul.f32 %v83, %v92
  %v96 = vmul.f32 %v86, %v92
  %v97 = vmul.f32 %v88, %v92
  %v98 = vld [vmem:[%s3] sm:$0x1]
  %v100 = vperm.slane %v98, 0
  %v102 = vadd.f32 %v94, %v100
  %v103 = vadd.f32 %v95, %v100
  %v104 = vadd.f32 %v96, %v100
  %v105 = vadd.f32 %v97, %v100
  %v106 = vmax.f32 %v102, 0.0
  %v107 = vmax.f32 %v103, 0.0
  %v108 = vmax.f32 %v104, 0.0
  %v109 = vmax.f32 %v105, 0.0
  %v110 = vpack.c.bf16 %v106, %v106
  %v111 = vpack.c.bf16 %v107, %v107
  %v112 = vpack.c.bf16 %v108, %v108
  %v113 = vpack.c.bf16 %v109, %v109
  %vm114 = vcmask 519168
  %115 = vst.msk [vmem:[%s4] sm:$0xf] %vm114, %v110
  %116 = vst.msk [vmem:[%s4 + $0x4] sm:$0xf] %vm114, %v111
  %117 = vst.msk [vmem:[%s4 + $0x8] sm:$0xf] %vm114, %v112
  %118 = vst.msk [vmem:[%s4 + $0xc] sm:$0xf] %vm114, %v113
  // Predicated region
  $region18: #{_lambda_.19} parent=0 // pred_check
    _
  $region19: #{_lambda_.19} parent=0 // pred_check_branch
    %120 = sbr.rel (0) target = $region21
  $region20: #{_lambda_.19} parent=0 // pred_region
    _
  $region21: #{_lambda_.19} parent=0 // pred_fallthru
    _
  // Predicated region
  $region22: #{_lambda_.19} parent=0 // pred_check
    _
  $region23: #{_lambda_.19} parent=0 // pred_check_branch
    %122 = sbr.rel (0) target = $region25
  $region24: #{_lambda_.19} parent=0 // pred_region
    _
  $region25: #{_lambda_.19} parent=0 // pred_fallthru
    _

// kernel: _lambda_.23
$region0: #{_lambda_.23}
  #allocation0 [shape = 'u32[]', space=smem, size = 0x4, offset = 0x4, fixed_abs, tag = 'smem constant byte address 0x4 - core index']
  #allocation1 [shape = 'u32[72,128]{1,0:T(1,128)}', space=vmem, size = 0x9000, scoped, tag = 'internal scratch']
  %s0 = inlined_call_operand.vmem [shape: bf16[32,256], index: 0, kind: input, shape index: {}]
  %s1 = inlined_call_operand.vmem [shape: bf16[32,256], index: 1, kind: input, shape index: {}]
  %s2 = inlined_call_operand.vmem [shape: bf16[32,256], index: 2, kind: output, shape index: {}]
  %s3 = sld [smem:[#allocation0]]
  $region18: #{_lambda_.23} parent=0
    _
  %s5 = ssub.s32 1, %s3
  %s6 = scalar_select 0, %s5, %s3
  // Predicated region
  $region2: #{_lambda_.23} parent=0 // pred_check
    _
  $region3: #{_lambda_.23} parent=0 // pred_check_branch
    %8 = sbr.rel (0) target = $region5
  $region4: #{_lambda_.23} parent=0 // pred_region
    _
  $region5: #{_lambda_.23} parent=0 // pred_fallthru
    _
  // Predicated region
  $region6: #{_lambda_.23} parent=0 // pred_check
    _
  $region7: #{_lambda_.23} parent=0 // pred_check_branch
    %10 = sbr.rel (0) target = $region9
  $region8: #{_lambda_.23} parent=0 // pred_region
    _
  $region9: #{_lambda_.23} parent=0 // pred_fallthru
    _
  %v11 = vld [vmem:[%s0] sm:$0xff]
  %v12 = vld [vmem:[%s0 + $0x8] sm:$0xff]
  %v13 = vld [vmem:[%s0 + $0x10] sm:$0xff]
  %v14 = vld [vmem:[%s0 + $0x18] sm:$0xff]
  %v15 = vunpack.c.l.bf16 %v11
  %v16 = vunpack.c.h.bf16 %v11
  %v17 = vunpack.c.l.bf16 %v12
  %v18 = vunpack.c.h.bf16 %v12
  %v19 = vunpack.c.l.bf16 %v13
  %v20 = vunpack.c.h.bf16 %v13
  %v21 = vunpack.c.l.bf16 %v14
  %v22 = vunpack.c.h.bf16 %v14
  %v23 = vld [vmem:[%s1] sm:$0xff]
  %v24 = vld [vmem:[%s1 + $0x8] sm:$0xff]
  %v25 = vld [vmem:[%s1 + $0x10] sm:$0xff]
  %v26 = vld [vmem:[%s1 + $0x18] sm:$0xff]
  %v27 = vunpack.c.l.bf16 %v23
  %v28 = vunpack.c.h.bf16 %v23
  %v29 = vunpack.c.l.bf16 %v24
  %v30 = vunpack.c.h.bf16 %v24
  %v31 = vunpack.c.l.bf16 %v25
  %v32 = vunpack.c.h.bf16 %v25
  %v33 = vunpack.c.l.bf16 %v26
  %v34 = vunpack.c.h.bf16 %v26
  %v35 = vadd.f32 %v15, %v27
  %v36 = vadd.f32 %v16, %v28
  %v37 = vadd.f32 %v17, %v29
  %v38 = vadd.f32 %v18, %v30
  %v39 = vadd.f32 %v19, %v31
  %v40 = vadd.f32 %v20, %v32
  %v41 = vadd.f32 %v21, %v33
  %v42 = vadd.f32 %v22, %v34
  %v43 = vmax.f32 %v35, 0.0
  %v44 = vmax.f32 %v36, 0.0
  %v45 = vmax.f32 %v37, 0.0
  %v46 = vmax.f32 %v38, 0.0
  %v47 = vmax.f32 %v39, 0.0
  %v48 = vmax.f32 %v40, 0.0
  %v49 = vmax.f32 %v41, 0.0
  %v50 = vmax.f32 %v42, 0.0
  %v51 = vpack.c.bf16 %v44, %v43
  %v52 = vpack.c.bf16 %v46, %v45
  %v53 = vpack.c.bf16 %v48, %v47
  %v54 = vpack.c.bf16 %v50, %v49
  %55 = vst [vmem:[%s2] sm:$0xff] %v51
  %56 = vst [vmem:[%s2 + $0x8] sm:$0xff] %v52
  %57 = vst [vmem:[%s2 + $0x10] sm:$0xff] %v53
  %58 = vst [vmem:[%s2 + $0x18] sm:$0xff] %v54
  // Predicated region
  $region10: #{_lambda_.23} parent=0 // pred_check
    _
  $region11: #{_lambda_.23} parent=0 // pred_check_branch
    %60 = sbr.rel (0) target = $region13
  $region12: #{_lambda_.23} parent=0 // pred_region
    _
  $region13: #{_lambda_.23} parent=0 // pred_fallthru
    _
  // Predicated region
  $region14: #{_lambda_.23} parent=0 // pred_check
    _
  $region15: #{_lambda_.23} parent=0 // pred_check_branch
    %62 = sbr.rel (0) target = $region17
  $region16: #{_lambda_.23} parent=0 // pred_region
    _
  $region17: #{_lambda_.23} parent=0 // pred_fallthru
    _

// kernel: _lambda_.20
$region0: #{_lambda_.20}
  #allocation0 [shape = 'u32[]', space=smem, size = 0x4, offset = 0x4, fixed_abs, tag = 'smem constant byte address 0x4 - core index']
  #allocation1 [shape = 'u32[72,128]{1,0:T(1,128)}', space=vmem, size = 0x9000, scoped, tag = 'internal scratch']
  %s0 = inlined_call_operand.vmem [shape: bf16[32,576], index: 0, kind: input, shape index: {}]
  %s1 = inlined_call_operand.vmem [shape: bf16[576,64], index: 1, kind: input, shape index: {}]
  %s2 = inlined_call_operand.vmem [shape: f32[1,64], index: 2, kind: input, shape index: {}]
  %s3 = inlined_call_operand.vmem [shape: f32[1,64], index: 3, kind: input, shape index: {}]
  %s4 = inlined_call_operand.vmem [shape: bf16[32,64], index: 4, kind: output, shape index: {}]
  %s5 = sld [smem:[#allocation0]]
  $region26: #{_lambda_.20} parent=0
    _
  %s7 = ssub.s32 1, %s5
  %s8 = scalar_select 0, %s7, %s5
  // Predicated region
  $region2: #{_lambda_.20} parent=0 // pred_check
    _
  $region3: #{_lambda_.20} parent=0 // pred_check_branch
    %10 = sbr.rel (0) target = $region5
  $region4: #{_lambda_.20} parent=0 // pred_region
    _
  $region5: #{_lambda_.20} parent=0 // pred_fallthru
    _
  // Predicated region
  $region6: #{_lambda_.20} parent=0 // pred_check
    _
  $region7: #{_lambda_.20} parent=0 // pred_check_branch
    %12 = sbr.rel (0) target = $region9
  $region8: #{_lambda_.20} parent=0 // pred_region
    _
  $region9: #{_lambda_.20} parent=0 // pred_fallthru
    _
  // Predicated region
  $region10: #{_lambda_.20} parent=0 // pred_check
    _
  $region11: #{_lambda_.20} parent=0 // pred_check_branch
    %14 = sbr.rel (0) target = $region13
  $region12: #{_lambda_.20} parent=0 // pred_region
    _
  $region13: #{_lambda_.20} parent=0 // pred_fallthru
    _
  // Predicated region
  $region14: #{_lambda_.20} parent=0 // pred_check
    _
  $region15: #{_lambda_.20} parent=0 // pred_check_branch
    %16 = sbr.rel (0) target = $region17
  $region16: #{_lambda_.20} parent=0 // pred_region
    _
  $region17: #{_lambda_.20} parent=0 // pred_fallthru
    _
  %v18 = vld [vmem:[%s0] sm:$0xff]
  %v19 = vld [vmem:[%s0 + $0x8] sm:$0xff]
  %v20 = vld [vmem:[%s0 + $0x10] sm:$0xf]
  %v21 = vld [vmem:[%s0 + $0x14] sm:$0xff]
  %v22 = vld [vmem:[%s0 + $0x1c] sm:$0xff]
  %v23 = vld [vmem:[%s0 + $0x24] sm:$0xf]
  %v24 = vld [vmem:[%s0 + $0x28] sm:$0xff]
  %v25 = vld [vmem:[%s0 + $0x30] sm:$0xff]
  %v26 = vld [vmem:[%s0 + $0x38] sm:$0xf]
  %v27 = vld [vmem:[%s0 + $0x3c] sm:$0xff]
  %v28 = vld [vmem:[%s0 + $0x44] sm:$0xff]
  %v29 = vld [vmem:[%s0 + $0x4c] sm:$0xf]
  %v30 = vld [vmem:[%s1] sm:$0xf]
  %v31 = vld [vmem:[%s1 + $0x4] sm:$0xf]
  %v32 = vld [vmem:[%s1 + $0x8] sm:$0xf]
  %v33 = vld [vmem:[%s1 + $0xc] sm:$0xf]
  %v34 = vld [vmem:[%s1 + $0x10] sm:$0xf]
  %v35 = vld [vmem:[%s1 + $0x14] sm:$0xf]
  %v36 = vld [vmem:[%s1 + $0x18] sm:$0xf]
  %v37 = vld [vmem:[%s1 + $0x1c] sm:$0xf]
  %v38 = vld [vmem:[%s1 + $0x20] sm:$0xf]
  %v39 = vld [vmem:[%s1 + $0x24] sm:$0xf]
  %v40 = vld [vmem:[%s1 + $0x28] sm:$0xf]
  %v41 = vld [vmem:[%s1 + $0x2c] sm:$0xf]
  %v42 = vld [vmem:[%s1 + $0x30] sm:$0xf]
  %v43 = vld [vmem:[%s1 + $0x34] sm:$0xf]
  %v44 = vld [vmem:[%s1 + $0x38] sm:$0xf]
  %v45 = vld [vmem:[%s1 + $0x3c] sm:$0xf]
  %v46 = vld [vmem:[%s1 + $0x40] sm:$0xf]
  %v47 = vld [vmem:[%s1 + $0x44] sm:$0xf]
  %v48 = vld [vmem:[%s1 + $0x48] sm:$0xf]
  %v49 = vld [vmem:[%s1 + $0x4c] sm:$0xf]
  %v50 = vld [vmem:[%s1 + $0x50] sm:$0xf]
  %v51 = vld [vmem:[%s1 + $0x54] sm:$0xf]
  %v52 = vld [vmem:[%s1 + $0x58] sm:$0xf]
  %v53 = vld [vmem:[%s1 + $0x5c] sm:$0xf]
  %v54 = vld [vmem:[%s1 + $0x60] sm:$0xf]
  %v55 = vld [vmem:[%s1 + $0x64] sm:$0xf]
  %v56 = vld [vmem:[%s1 + $0x68] sm:$0xf]
  %v57 = vld [vmem:[%s1 + $0x6c] sm:$0xf]
  %v58 = vld [vmem:[%s1 + $0x70] sm:$0xf]
  %v59 = vld [vmem:[%s1 + $0x74] sm:$0xf]
  %v60 = vld [vmem:[%s1 + $0x78] sm:$0xf]
  %v61 = vld [vmem:[%s1 + $0x7c] sm:$0xf]
  %v62 = vld [vmem:[%s1 + $0x80] sm:$0xf]
  %v63 = vld [vmem:[%s1 + $0x84] sm:$0xf]
  %v64 = vld [vmem:[%s1 + $0x88] sm:$0xf]
  %v65 = vld [vmem:[%s1 + $0x8c] sm:$0xf]
  %v66 = vld [vmem:[%s1 + $0x90] sm:$0xf]
  %v67 = vld [vmem:[%s1 + $0x94] sm:$0xf]
  %v68 = vld [vmem:[%s1 + $0x98] sm:$0xf]
  %v69 = vld [vmem:[%s1 + $0x9c] sm:$0xf]
  %v70 = vld [vmem:[%s1 + $0xa0] sm:$0xf]
  %v71 = vld [vmem:[%s1 + $0xa4] sm:$0xf]
  %v72 = vld [vmem:[%s1 + $0xa8] sm:$0xf]
  %v73 = vld [vmem:[%s1 + $0xac] sm:$0xf]
  %v74 = vld [vmem:[%s1 + $0xb0] sm:$0xf]
  %v75 = vld [vmem:[%s1 + $0xb4] sm:$0xf]
  %v76 = vld [vmem:[%s1 + $0xb8] sm:$0xf]
  %v77 = vld [vmem:[%s1 + $0xbc] sm:$0xf]
  %v78 = vld [vmem:[%s1 + $0xc0] sm:$0xf]
  %v79 = vld [vmem:[%s1 + $0xc4] sm:$0xf]
  %v80 = vld [vmem:[%s1 + $0xc8] sm:$0xf]
  %v81 = vld [vmem:[%s1 + $0xcc] sm:$0xf]
  %v82 = vld [vmem:[%s1 + $0xd0] sm:$0xf]
  %v83 = vld [vmem:[%s1 + $0xd4] sm:$0xf]
  %v84 = vld [vmem:[%s1 + $0xd8] sm:$0xf]
  %v85 = vld [vmem:[%s1 + $0xdc] sm:$0xf]
  %v86 = vld [vmem:[%s1 + $0xe0] sm:$0xf]
  %v87 = vld [vmem:[%s1 + $0xe4] sm:$0xf]
  %v88 = vld [vmem:[%s1 + $0xe8] sm:$0xf]
  %v89 = vld [vmem:[%s1 + $0xec] sm:$0xf]
  %v90 = vld [vmem:[%s1 + $0xf0] sm:$0xf]
  %v91 = vld [vmem:[%s1 + $0xf4] sm:$0xf]
  %v92 = vld [vmem:[%s1 + $0xf8] sm:$0xf]
  %v93 = vld [vmem:[%s1 + $0xfc] sm:$0xf]
  %v94 = vld [vmem:[%s1 + $0x100] sm:$0xf]
  %v95 = vld [vmem:[%s1 + $0x104] sm:$0xf]
  %v96 = vld [vmem:[%s1 + $0x108] sm:$0xf]
  %v97 = vld [vmem:[%s1 + $0x10c] sm:$0xf]
  %v98 = vld [vmem:[%s1 + $0x110] sm:$0xf]
  %v99 = vld [vmem:[%s1 + $0x114] sm:$0xf]
  %v100 = vld [vmem:[%s1 + $0x118] sm:$0xf]
  %v101 = vld [vmem:[%s1 + $0x11c] sm:$0xf]
  %v114 = vunpack.c.l.b16 %v18
  %v115 = vunpack.c.h.b16 %v18
  %v116 = vunpack.c.l.b16 %v19
  %v117 = vunpack.c.h.b16 %v19
  %v118 = vunpack.c.l.b16 %v20
  %v119 = vunpack.c.l.b16 %v21
  %v120 = vunpack.c.h.b16 %v21
  %v121 = vunpack.c.l.b16 %v22
  %v122 = vunpack.c.h.b16 %v22
  %v123 = vunpack.c.l.b16 %v23
  %v124 = vunpack.c.l.b16 %v24
  %v125 = vunpack.c.h.b16 %v24
  %v126 = vunpack.c.l.b16 %v25
  %v127 = vunpack.c.h.b16 %v25
  %v128 = vunpack.c.l.b16 %v26
  %v129 = vunpack.c.l.b16 %v27
  %v130 = vunpack.c.h.b16 %v27
  %v131 = vunpack.c.l.b16 %v28
  %v132 = vunpack.c.h.b16 %v28
  %v133 = vunpack.c.l.b16 %v29
  %v134 = vpack.c.b16 %v119, %v114
  %v135 = vpack.c.b16 %v120, %v115
  %v136 = vpack.c.b16 %v121, %v116
  %v137 = vpack.c.b16 %v122, %v117
  %v138 = vpack.c.b16 %v123, %v118
  %v139 = vpack.c.b16 %v129, %v124
  %v140 = vpack.c.b16 %v130, %v125
  %v141 = vpack.c.b16 %v131, %v126
  %v142 = vpack.c.b16 %v132, %v127
  %v143 = vpack.c.b16 %v133, %v128
  %v224 = vunpack.c.l.b16 %v30
  %v225 = vunpack.c.l.b16 %v31
  %v226 = vunpack.c.l.b16 %v32
  %v227 = vunpack.c.l.b16 %v33
  %v228 = vunpack.c.l.b16 %v34
  %v229 = vunpack.c.l.b16 %v35
  %v230 = vunpack.c.l.b16 %v36
  %v231 = vunpack.c.l.b16 %v37
  %v232 = vunpack.c.l.b16 %v38
  %v233 = vunpack.c.l.b16 %v39
  %v234 = vunpack.c.l.b16 %v40
  %v235 = vunpack.c.l.b16 %v41
  %v236 = vunpack.c.l.b16 %v42
  %v237 = vunpack.c.l.b16 %v43
  %v238 = vunpack.c.l.b16 %v44
  %v239 = vunpack.c.l.b16 %v45
  %v240 = vunpack.c.l.b16 %v46
  %v241 = vunpack.c.l.b16 %v47
  %v242 = vunpack.c.l.b16 %v48
  %v243 = vunpack.c.l.b16 %v49
  %v244 = vunpack.c.l.b16 %v50
  %v245 = vunpack.c.l.b16 %v51
  %v246 = vunpack.c.l.b16 %v52
  %v247 = vunpack.c.l.b16 %v53
  %v248 = vunpack.c.l.b16 %v54
  %v249 = vunpack.c.l.b16 %v55
  %v250 = vunpack.c.l.b16 %v56
  %v251 = vunpack.c.l.b16 %v57
  %v252 = vunpack.c.l.b16 %v58
  %v253 = vunpack.c.l.b16 %v59
  %v254 = vunpack.c.l.b16 %v60
  %v255 = vunpack.c.l.b16 %v61
  %v256 = vunpack.c.l.b16 %v62
  %v257 = vunpack.c.l.b16 %v63
  %v258 = vunpack.c.l.b16 %v64
  %v259 = vunpack.c.l.b16 %v65
  %v260 = vunpack.c.l.b16 %v66
  %v261 = vunpack.c.l.b16 %v67
  %v262 = vunpack.c.l.b16 %v68
  %v263 = vunpack.c.l.b16 %v69
  %v264 = vunpack.c.l.b16 %v70
  %v265 = vunpack.c.l.b16 %v71
  %v266 = vunpack.c.l.b16 %v72
  %v267 = vunpack.c.l.b16 %v73
  %v268 = vunpack.c.l.b16 %v74
  %v269 = vunpack.c.l.b16 %v75
  %v270 = vunpack.c.l.b16 %v76
  %v271 = vunpack.c.l.b16 %v77
  %v272 = vunpack.c.l.b16 %v78
  %v273 = vunpack.c.l.b16 %v79
  %v274 = vunpack.c.l.b16 %v80
  %v275 = vunpack.c.l.b16 %v81
  %v276 = vunpack.c.l.b16 %v82
  %v277 = vunpack.c.l.b16 %v83
  %v278 = vunpack.c.l.b16 %v84
  %v279 = vunpack.c.l.b16 %v85
  %v280 = vunpack.c.l.b16 %v86
  %v281 = vunpack.c.l.b16 %v87
  %v282 = vunpack.c.l.b16 %v88
  %v283 = vunpack.c.l.b16 %v89
  %v284 = vunpack.c.l.b16 %v90
  %v285 = vunpack.c.l.b16 %v91
  %v286 = vunpack.c.l.b16 %v92
  %v287 = vunpack.c.l.b16 %v93
  %v288 = vunpack.c.l.b16 %v94
  %v289 = vunpack.c.l.b16 %v95
  %v290 = vunpack.c.l.b16 %v96
  %v291 = vunpack.c.l.b16 %v97
  %v292 = vunpack.c.l.b16 %v98
  %v293 = vunpack.c.l.b16 %v99
  %v294 = vunpack.c.l.b16 %v100
  %v295 = vunpack.c.l.b16 %v101
  %v296 = vpack.c.b16 %v225, %v224
  %v297 = vpack.c.b16 %v227, %v226
  %v298 = vpack.c.b16 %v229, %v228
  %v299 = vpack.c.b16 %v231, %v230
  %v300 = vpack.c.b16 %v233, %v232
  %v301 = vpack.c.b16 %v235, %v234
  %v302 = vpack.c.b16 %v237, %v236
  %v303 = vpack.c.b16 %v239, %v238
  %v304 = vpack.c.b16 %v241, %v240
  %v305 = vpack.c.b16 %v243, %v242
  %v306 = vpack.c.b16 %v245, %v244
  %v307 = vpack.c.b16 %v247, %v246
  %v308 = vpack.c.b16 %v249, %v248
  %v309 = vpack.c.b16 %v251, %v250
  %v310 = vpack.c.b16 %v253, %v252
  %v311 = vpack.c.b16 %v255, %v254
  %v312 = vpack.c.b16 %v257, %v256
  %v313 = vpack.c.b16 %v259, %v258
  %v314 = vpack.c.b16 %v261, %v260
  %v315 = vpack.c.b16 %v263, %v262
  %v316 = vpack.c.b16 %v265, %v264
  %v317 = vpack.c.b16 %v267, %v266
  %v318 = vpack.c.b16 %v269, %v268
  %v319 = vpack.c.b16 %v271, %v270
  %v320 = vpack.c.b16 %v273, %v272
  %v321 = vpack.c.b16 %v275, %v274
  %v322 = vpack.c.b16 %v277, %v276
  %v323 = vpack.c.b16 %v279, %v278
  %v324 = vpack.c.b16 %v281, %v280
  %v325 = vpack.c.b16 %v283, %v282
  %v326 = vpack.c.b16 %v285, %v284
  %v327 = vpack.c.b16 %v287, %v286
  %v328 = vpack.c.b16 %v289, %v288
  %v329 = vpack.c.b16 %v291, %v290
  %v330 = vpack.c.b16 %v293, %v292
  %v331 = vpack.c.b16 %v295, %v294
  %vm368 = vcmask 523264
  %v370 = vsel %vm368, %v138, 0
  %v373 = vsel %vm368, %v143, 0
  %375 = vmatpush.bf16.msra.mxu0 %v303
  %376 = vmatpush.bf16.msra.mxu0 %v302
  %377 = vmatpush.bf16.msra.mxu0 %v301
  %378 = vmatpush.bf16.msra.mxu0 %v300
  %379 = vmatpush.bf16.msra.mxu0 %v299
  %380 = vmatpush.bf16.msra.mxu0 %v298
  %381 = vmatpush.bf16.msra.mxu0 %v297
  %382 = vmatpush.bf16.msra.mxu0 %v296
  %383 = vmatmul.bf16.gmra.mxu0 %v134
  %v384 = vpop.f32.mrf.mxu0
  %v385 = vadd.f32 0.0, %v384
  %v386 = vpop.f32.mrf.mxu0
  %v387 = vadd.f32 0.0, %v386
  %388 = vmatmul.bf16.gmra.mxu0 %v139
  %v389 = vpop.f32.mrf.mxu0
  %v390 = vadd.f32 0.0, %v389
  %v391 = vpop.f32.mrf.mxu0
  %v392 = vadd.f32 0.0, %v391
  %393 = vdwg.mxu0
  %394 = vmatpush.bf16.msra.mxu0 %v311
  %395 = vmatpush.bf16.msra.mxu0 %v310
  %396 = vmatpush.bf16.msra.mxu0 %v309
  %397 = vmatpush.bf16.msra.mxu0 %v308
  %398 = vmatpush.bf16.msra.mxu0 %v307
  %399 = vmatpush.bf16.msra.mxu0 %v306
  %400 = vmatpush.bf16.msra.mxu0 %v305
  %401 = vmatpush.bf16.msra.mxu0 %v304
  %402 = vmatmul.bf16.gmra.mxu0 %v135
  %v403 = vpop.f32.mrf.mxu0
  %v404 = vadd.f32 %v385, %v403
  %v405 = vpop.f32.mrf.mxu0
  %v406 = vadd.f32 %v387, %v405
  %407 = vmatmul.bf16.gmra.mxu0 %v140
  %v408 = vpop.f32.mrf.mxu0
  %v409 = vadd.f32 %v390, %v408
  %v410 = vpop.f32.mrf.mxu0
  %v411 = vadd.f32 %v392, %v410
  %412 = vdwg.mxu0
  %413 = vmatpush.bf16.msra.mxu0 %v319
  %414 = vmatpush.bf16.msra.mxu0 %v318
  %415 = vmatpush.bf16.msra.mxu0 %v317
  %416 = vmatpush.bf16.msra.mxu0 %v316
  %417 = vmatpush.bf16.msra.mxu0 %v315
  %418 = vmatpush.bf16.msra.mxu0 %v314
  %419 = vmatpush.bf16.msra.mxu0 %v313
  %420 = vmatpush.bf16.msra.mxu0 %v312
  %421 = vmatmul.bf16.gmra.mxu0 %v136
  %v422 = vpop.f32.mrf.mxu0
  %v423 = vadd.f32 %v404, %v422
  %v424 = vpop.f32.mrf.mxu0
  %v425 = vadd.f32 %v406, %v424
  %426 = vmatmul.bf16.gmra.mxu0 %v141
  %v427 = vpop.f32.mrf.mxu0
  %v428 = vadd.f32 %v409, %v427
  %v429 = vpop.f32.mrf.mxu0
  %v430 = vadd.f32 %v411, %v429
  %431 = vdwg.mxu0
  %432 = vmatpush.bf16.msra.mxu0 %v327
  %433 = vmatpush.bf16.msra.mxu0 %v326
  %434 = vmatpush.bf16.msra.mxu0 %v325
  %435 = vmatpush.bf16.msra.mxu0 %v324
  %436 = vmatpush.bf16.msra.mxu0 %v323
  %437 = vmatpush.bf16.msra.mxu0 %v322
  %438 = vmatpush.bf16.msra.mxu0 %v321
  %439 = vmatpush.bf16.msra.mxu0 %v320
  %440 = vmatmul.bf16.gmra.mxu0 %v137
  %v441 = vpop.f32.mrf.mxu0
  %v442 = vadd.f32 %v423, %v441
  %v443 = vpop.f32.mrf.mxu0
  %v444 = vadd.f32 %v425, %v443
  %445 = vmatmul.bf16.gmra.mxu0 %v142
  %v446 = vpop.f32.mrf.mxu0
  %v447 = vadd.f32 %v428, %v446
  %v448 = vpop.f32.mrf.mxu0
  %v449 = vadd.f32 %v430, %v448
  %450 = vdwg.mxu0
  %451 = vmatpush.bf16.msra.mxu0 0
  %452 = vmatpush.bf16.msra.mxu0 0
  %453 = vmatpush.bf16.msra.mxu0 0
  %454 = vmatpush.bf16.msra.mxu0 0
  %455 = vmatpush.bf16.msra.mxu0 %v331
  %456 = vmatpush.bf16.msra.mxu0 %v330
  %457 = vmatpush.bf16.msra.mxu0 %v329
  %458 = vmatpush.bf16.msra.mxu0 %v328
  %459 = vmatmul.bf16.gmra.mxu0 %v370
  %v460 = vpop.f32.mrf.mxu0
  %v461 = vadd.f32 %v442, %v460
  %v462 = vpop.f32.mrf.mxu0
  %v463 = vadd.f32 %v444, %v462
  %464 = vmatmul.bf16.gmra.mxu0 %v373
  %v465 = vpop.f32.mrf.mxu0
  %v466 = vadd.f32 %v447, %v465
  %v467 = vpop.f32.mrf.mxu0
  %v468 = vadd.f32 %v449, %v467
  %469 = vdwg.mxu0
  %v470 = vld [vmem:[%s2] sm:$0x1]
  %v472 = vperm.slane %v470, 0
  %v474 = vmul.f32 %v461, %v472
  %v475 = vmul.f32 %v463, %v472
  %v476 = vmul.f32 %v466, %v472
  %v477 = vmul.f32 %v468, %v472
  %v478 = vld [vmem:[%s3] sm:$0x1]
  %v480 = vperm.slane %v478, 0
  %v482 = vadd.f32 %v474, %v480
  %v483 = vadd.f32 %v475, %v480
  %v484 = vadd.f32 %v476, %v480
  %v485 = vadd.f32 %v477, %v480
  %v486 = vmax.f32 %v482, 0.0
  %v487 = vmax.f32 %v483, 0.0
  %v488 = vmax.f32 %v484, 0.0
  %v489 = vmax.f32 %v485, 0.0
  %v490 = vpack.c.bf16 %v486, %v486
  %v491 = vpack.c.bf16 %v487, %v487
  %v492 = vpack.c.bf16 %v488, %v488
  %v493 = vpack.c.bf16 %v489, %v489
  %vm494 = vcmask 519168
  %495 = vst.msk [vmem:[%s4] sm:$0xf] %vm494, %v490
  %496 = vst.msk [vmem:[%s4 + $0x4] sm:$0xf] %vm494, %v491
  %497 = vst.msk [vmem:[%s4 + $0x8] sm:$0xf] %vm494, %v492
  %498 = vst.msk [vmem:[%s4 + $0xc] sm:$0xf] %vm494, %v493
  // Predicated region
  $region18: #{_lambda_.20} parent=0 // pred_check
    _
  $region19: #{_lambda_.20} parent=0 // pred_check_branch
    %500 = sbr.rel (0) target = $region21
  $region20: #{_lambda_.20} parent=0 // pred_region
    _
  $region21: #{_lambda_.20} parent=0 // pred_fallthru
    _
  // Predicated region
  $region22: #{_lambda_.20} parent=0 // pred_check
    _
  $region23: #{_lambda_.20} parent=0 // pred_check_branch
    %502 = sbr.rel (0) target = $region25
  $region24: #{_lambda_.20} parent=0 // pred_region
    _
  $region25: #{_lambda_.20} parent=0 // pred_fallthru
    _

// kernel: _lambda_.21
$region0: #{_lambda_.21}
  #allocation0 [shape = 'u32[]', space=smem, size = 0x4, offset = 0x4, fixed_abs, tag = 'smem constant byte address 0x4 - core index']
  #allocation1 [shape = 'u32[72,128]{1,0:T(1,128)}', space=vmem, size = 0x9000, scoped, tag = 'internal scratch']
  %s0 = inlined_call_operand.vmem [shape: bf16[32,64], index: 0, kind: input, shape index: {}]
  %s1 = inlined_call_operand.vmem [shape: bf16[64,256], index: 1, kind: input, shape index: {}]
  %s2 = inlined_call_operand.vmem [shape: f32[1,256], index: 2, kind: input, shape index: {}]
  %s3 = inlined_call_operand.vmem [shape: f32[1,256], index: 3, kind: input, shape index: {}]
  %s4 = inlined_call_operand.vmem [shape: bf16[32,256], index: 4, kind: output, shape index: {}]
  %s5 = sld [smem:[#allocation0]]
  $region26: #{_lambda_.21} parent=0
    _
  %s7 = ssub.s32 1, %s5
  %s8 = scalar_select 0, %s7, %s5
  // Predicated region
  $region2: #{_lambda_.21} parent=0 // pred_check
    _
  $region3: #{_lambda_.21} parent=0 // pred_check_branch
    %10 = sbr.rel (0) target = $region5
  $region4: #{_lambda_.21} parent=0 // pred_region
    _
  $region5: #{_lambda_.21} parent=0 // pred_fallthru
    _
  // Predicated region
  $region6: #{_lambda_.21} parent=0 // pred_check
    _
  $region7: #{_lambda_.21} parent=0 // pred_check_branch
    %12 = sbr.rel (0) target = $region9
  $region8: #{_lambda_.21} parent=0 // pred_region
    _
  $region9: #{_lambda_.21} parent=0 // pred_fallthru
    _
  // Predicated region
  $region10: #{_lambda_.21} parent=0 // pred_check
    _
  $region11: #{_lambda_.21} parent=0 // pred_check_branch
    %14 = sbr.rel (0) target = $region13
  $region12: #{_lambda_.21} parent=0 // pred_region
    _
  $region13: #{_lambda_.21} parent=0 // pred_fallthru
    _
  // Predicated region
  $region14: #{_lambda_.21} parent=0 // pred_check
    _
  $region15: #{_lambda_.21} parent=0 // pred_check_branch
    %16 = sbr.rel (0) target = $region17
  $region16: #{_lambda_.21} parent=0 // pred_region
    _
  $region17: #{_lambda_.21} parent=0 // pred_fallthru
    _
  %v18 = vld [vmem:[%s0] sm:$0xf]
  %v19 = vld [vmem:[%s0 + $0x4] sm:$0xf]
  %v20 = vld [vmem:[%s0 + $0x8] sm:$0xf]
  %v21 = vld [vmem:[%s0 + $0xc] sm:$0xf]
  %v22 = vld [vmem:[%s1] sm:$0xff]
  %v23 = vld [vmem:[%s1 + $0x8] sm:$0xff]
  %v24 = vld [vmem:[%s1 + $0x10] sm:$0xff]
  %v25 = vld [vmem:[%s1 + $0x18] sm:$0xff]
  %v26 = vld [vmem:[%s1 + $0x20] sm:$0xff]
  %v27 = vld [vmem:[%s1 + $0x28] sm:$0xff]
  %v28 = vld [vmem:[%s1 + $0x30] sm:$0xff]
  %v29 = vld [vmem:[%s1 + $0x38] sm:$0xff]
  %v34 = vunpack.c.l.b16 %v18
  %v35 = vunpack.c.l.b16 %v19
  %v36 = vunpack.c.l.b16 %v20
  %v37 = vunpack.c.l.b16 %v21
  %v38 = vpack.c.b16 %v35, %v34
  %v39 = vpack.c.b16 %v37, %v36
  %v48 = vunpack.c.l.b16 %v22
  %v49 = vunpack.c.h.b16 %v22
  %v50 = vunpack.c.l.b16 %v23
  %v51 = vunpack.c.h.b16 %v23
  %v52 = vunpack.c.l.b16 %v24
  %v53 = vunpack.c.h.b16 %v24
  %v54 = vunpack.c.l.b16 %v25
  %v55 = vunpack.c.h.b16 %v25
  %v56 = vunpack.c.l.b16 %v26
  %v57 = vunpack.c.h.b16 %v26
  %v58 = vunpack.c.l.b16 %v27
  %v59 = vunpack.c.h.b16 %v27
  %v60 = vunpack.c.l.b16 %v28
  %v61 = vunpack.c.h.b16 %v28
  %v62 = vunpack.c.l.b16 %v29
  %v63 = vunpack.c.h.b16 %v29
  %v64 = vpack.c.b16 %v50, %v48
  %v65 = vpack.c.b16 %v51, %v49
  %v66 = vpack.c.b16 %v54, %v52
  %v67 = vpack.c.b16 %v55, %v53
  %v68 = vpack.c.b16 %v58, %v56
  %v69 = vpack.c.b16 %v59, %v57
  %v70 = vpack.c.b16 %v62, %v60
  %v71 = vpack.c.b16 %v63, %v61
  %vm80 = vcmask 523264
  %v82 = vsel %vm80, %v38, 0
  %v85 = vsel %vm80, %v39, 0
  %87 = vmatpush.bf16.msra.mxu0 0
  %88 = vmatpush.bf16.msra.mxu0 0
  %89 = vmatpush.bf16.msra.mxu0 0
  %90 = vmatpush.bf16.msra.mxu0 0
  %91 = vmatpush.bf16.msra.mxu0 %v70
  %92 = vmatpush.bf16.msra.mxu0 %v68
  %93 = vmatpush.bf16.msra.mxu0 %v66
  %94 = vmatpush.bf16.msra.mxu0 %v64
  %95 = vmatmul.bf16.gmra.mxu0 %v82
  %v96 = vpop.f32.mrf.mxu0
  %v97 = vadd.f32 0.0, %v96
  %v98 = vpop.f32.mrf.mxu0
  %v99 = vadd.f32 0.0, %v98
  %100 = vmatmul.bf16.gmra.mxu0 %v85
  %v101 = vpop.f32.mrf.mxu0
  %v102 = vadd.f32 0.0, %v101
  %v103 = vpop.f32.mrf.mxu0
  %v104 = vadd.f32 0.0, %v103
  %105 = vdwg.mxu0
  %106 = vmatpush.bf16.msra.mxu0 0
  %107 = vmatpush.bf16.msra.mxu0 0
  %108 = vmatpush.bf16.msra.mxu0 0
  %109 = vmatpush.bf16.msra.mxu0 0
  %110 = vmatpush.bf16.msra.mxu0 %v71
  %111 = vmatpush.bf16.msra.mxu0 %v69
  %112 = vmatpush.bf16.msra.mxu0 %v67
  %113 = vmatpush.bf16.msra.mxu0 %v65
  %114 = vmatmul.bf16.gmra.mxu0 %v82
  %v115 = vpop.f32.mrf.mxu0
  %v116 = vadd.f32 0.0, %v115
  %v117 = vpop.f32.mrf.mxu0
  %v118 = vadd.f32 0.0, %v117
  %119 = vmatmul.bf16.gmra.mxu0 %v85
  %v120 = vpop.f32.mrf.mxu0
  %v121 = vadd.f32 0.0, %v120
  %v122 = vpop.f32.mrf.mxu0
  %v123 = vadd.f32 0.0, %v122
  %124 = vdwg.mxu0
  %v125 = vld [vmem:[%s2] sm:$0x3]
  %v127 = vperm.slane %v125, 0
  %v128 = vperm.slane %v125, 1
  %v131 = vmul.f32 %v97, %v127
  %v132 = vmul.f32 %v116, %v128
  %v133 = vmul.f32 %v99, %v127
  %v134 = vmul.f32 %v118, %v128
  %v135 = vmul.f32 %v102, %v127
  %v136 = vmul.f32 %v121, %v128
  %v137 = vmul.f32 %v104, %v127
  %v138 = vmul.f32 %v123, %v128
  %v139 = vld [vmem:[%s3] sm:$0x3]
  %v141 = vperm.slane %v139, 0
  %v142 = vperm.slane %v139, 1
  %v145 = vadd.f32 %v131, %v141
  %v146 = vadd.f32 %v132, %v142
  %v147 = vadd.f32 %v133, %v141
  %v148 = vadd.f32 %v134, %v142
  %v149 = vadd.f32 %v135, %v141
  %v150 = vadd.f32 %v136, %v142
  %v151 = vadd.f32 %v137, %v141
  %v152 = vadd.f32 %v138, %v142
  %v153 = vpack.c.bf16 %v146, %v145
  %v154 = vpack.c.bf16 %v148, %v147
  %v155 = vpack.c.bf16 %v150, %v149
  %v156 = vpack.c.bf16 %v152, %v151
  %157 = vst [vmem:[%s4] sm:$0xff] %v153
  %158 = vst [vmem:[%s4 + $0x8] sm:$0xff] %v154
  %159 = vst [vmem:[%s4 + $0x10] sm:$0xff] %v155
  %160 = vst [vmem:[%s4 + $0x18] sm:$0xff] %v156
  // Predicated region
  $region18: #{_lambda_.21} parent=0 // pred_check
    _
  $region19: #{_lambda_.21} parent=0 // pred_check_branch
    %162 = sbr.rel (0) target = $region21
  $region20: #{_lambda_.21} parent=0 // pred_region
    _
  $region21: #{_lambda_.21} parent=0 // pred_fallthru
    _
  // Predicated region
  $region22: #{_lambda_.21} parent=0 // pred_check
    _
  $region23: #{_lambda_.21} parent=0 // pred_check_branch
    %164 = sbr.rel (0) target = $region25
  $region24: #{_lambda_.21} parent=0 // pred_region
    _
  $region25: #{_lambda_.21} parent=0 // pred_fallthru
    _

// kernel: _lambda_.24
$region0: #{_lambda_.24}
  #allocation0 [shape = 'u32[]', space=smem, size = 0x4, offset = 0x4, fixed_abs, tag = 'smem constant byte address 0x4 - core index']
  #allocation1 [shape = 'u32[72,128]{1,0:T(1,128)}', space=vmem, size = 0x9000, scoped, tag = 'internal scratch']
  %s0 = inlined_call_operand.vmem [shape: bf16[32,256], index: 0, kind: input, shape index: {}]
  %s1 = inlined_call_operand.vmem [shape: bf16[256,64], index: 1, kind: input, shape index: {}]
  %s2 = inlined_call_operand.vmem [shape: f32[1,64], index: 2, kind: input, shape index: {}]
  %s3 = inlined_call_operand.vmem [shape: f32[1,64], index: 3, kind: input, shape index: {}]
  %s4 = inlined_call_operand.vmem [shape: bf16[32,64], index: 4, kind: output, shape index: {}]
  %s5 = sld [smem:[#allocation0]]
  $region26: #{_lambda_.24} parent=0
    _
  %s7 = ssub.s32 1, %s5
  %s8 = scalar_select 0, %s7, %s5
  // Predicated region
  $region2: #{_lambda_.24} parent=0 // pred_check
    _
  $region3: #{_lambda_.24} parent=0 // pred_check_branch
    %10 = sbr.rel (0) target = $region5
  $region4: #{_lambda_.24} parent=0 // pred_region
    _
  $region5: #{_lambda_.24} parent=0 // pred_fallthru
    _
  // Predicated region
  $region6: #{_lambda_.24} parent=0 // pred_check
    _
  $region7: #{_lambda_.24} parent=0 // pred_check_branch
    %12 = sbr.rel (0) target = $region9
  $region8: #{_lambda_.24} parent=0 // pred_region
    _
  $region9: #{_lambda_.24} parent=0 // pred_fallthru
    _
  // Predicated region
  $region10: #{_lambda_.24} parent=0 // pred_check
    _
  $region11: #{_lambda_.24} parent=0 // pred_check_branch
    %14 = sbr.rel (0) target = $region13
  $region12: #{_lambda_.24} parent=0 // pred_region
    _
  $region13: #{_lambda_.24} parent=0 // pred_fallthru
    _
  // Predicated region
  $region14: #{_lambda_.24} parent=0 // pred_check
    _
  $region15: #{_lambda_.24} parent=0 // pred_check_branch
    %16 = sbr.rel (0) target = $region17
  $region16: #{_lambda_.24} parent=0 // pred_region
    _
  $region17: #{_lambda_.24} parent=0 // pred_fallthru
    _
  %v17 = vld [vmem:[%s0] sm:$0xff]
  %v18 = vld [vmem:[%s0 + $0x8] sm:$0xff]
  %v19 = vld [vmem:[%s0 + $0x10] sm:$0xff]
  %v20 = vld [vmem:[%s0 + $0x18] sm:$0xff]
  %v21 = vld [vmem:[%s1] sm:$0xf]
  %v22 = vld [vmem:[%s1 + $0x4] sm:$0xf]
  %v23 = vld [vmem:[%s1 + $0x8] sm:$0xf]
  %v24 = vld [vmem:[%s1 + $0xc] sm:$0xf]
  %v25 = vld [vmem:[%s1 + $0x10] sm:$0xf]
  %v26 = vld [vmem:[%s1 + $0x14] sm:$0xf]
  %v27 = vld [vmem:[%s1 + $0x18] sm:$0xf]
  %v28 = vld [vmem:[%s1 + $0x1c] sm:$0xf]
  %v29 = vld [vmem:[%s1 + $0x20] sm:$0xf]
  %v30 = vld [vmem:[%s1 + $0x24] sm:$0xf]
  %v31 = vld [vmem:[%s1 + $0x28] sm:$0xf]
  %v32 = vld [vmem:[%s1 + $0x2c] sm:$0xf]
  %v33 = vld [vmem:[%s1 + $0x30] sm:$0xf]
  %v34 = vld [vmem:[%s1 + $0x34] sm:$0xf]
  %v35 = vld [vmem:[%s1 + $0x38] sm:$0xf]
  %v36 = vld [vmem:[%s1 + $0x3c] sm:$0xf]
  %v37 = vld [vmem:[%s1 + $0x40] sm:$0xf]
  %v38 = vld [vmem:[%s1 + $0x44] sm:$0xf]
  %v39 = vld [vmem:[%s1 + $0x48] sm:$0xf]
  %v40 = vld [vmem:[%s1 + $0x4c] sm:$0xf]
  %v41 = vld [vmem:[%s1 + $0x50] sm:$0xf]
  %v42 = vld [vmem:[%s1 + $0x54] sm:$0xf]
  %v43 = vld [vmem:[%s1 + $0x58] sm:$0xf]
  %v44 = vld [vmem:[%s1 + $0x5c] sm:$0xf]
  %v45 = vld [vmem:[%s1 + $0x60] sm:$0xf]
  %v46 = vld [vmem:[%s1 + $0x64] sm:$0xf]
  %v47 = vld [vmem:[%s1 + $0x68] sm:$0xf]
  %v48 = vld [vmem:[%s1 + $0x6c] sm:$0xf]
  %v49 = vld [vmem:[%s1 + $0x70] sm:$0xf]
  %v50 = vld [vmem:[%s1 + $0x74] sm:$0xf]
  %v51 = vld [vmem:[%s1 + $0x78] sm:$0xf]
  %v52 = vld [vmem:[%s1 + $0x7c] sm:$0xf]
  %v57 = vunpack.c.l.b16 %v17
  %v58 = vunpack.c.h.b16 %v17
  %v59 = vunpack.c.l.b16 %v18
  %v60 = vunpack.c.h.b16 %v18
  %v61 = vunpack.c.l.b16 %v19
  %v62 = vunpack.c.h.b16 %v19
  %v63 = vunpack.c.l.b16 %v20
  %v64 = vunpack.c.h.b16 %v20
  %v65 = vpack.c.b16 %v59, %v57
  %v66 = vpack.c.b16 %v60, %v58
  %v67 = vpack.c.b16 %v63, %v61
  %v68 = vpack.c.b16 %v64, %v62
  %v105 = vunpack.c.l.b16 %v21
  %v106 = vunpack.c.l.b16 %v22
  %v107 = vunpack.c.l.b16 %v23
  %v108 = vunpack.c.l.b16 %v24
  %v109 = vunpack.c.l.b16 %v25
  %v110 = vunpack.c.l.b16 %v26
  %v111 = vunpack.c.l.b16 %v27
  %v112 = vunpack.c.l.b16 %v28
  %v113 = vunpack.c.l.b16 %v29
  %v114 = vunpack.c.l.b16 %v30
  %v115 = vunpack.c.l.b16 %v31
  %v116 = vunpack.c.l.b16 %v32
  %v117 = vunpack.c.l.b16 %v33
  %v118 = vunpack.c.l.b16 %v34
  %v119 = vunpack.c.l.b16 %v35
  %v120 = vunpack.c.l.b16 %v36
  %v121 = vunpack.c.l.b16 %v37
  %v122 = vunpack.c.l.b16 %v38
  %v123 = vunpack.c.l.b16 %v39
  %v124 = vunpack.c.l.b16 %v40
  %v125 = vunpack.c.l.b16 %v41
  %v126 = vunpack.c.l.b16 %v42
  %v127 = vunpack.c.l.b16 %v43
  %v128 = vunpack.c.l.b16 %v44
  %v129 = vunpack.c.l.b16 %v45
  %v130 = vunpack.c.l.b16 %v46
  %v131 = vunpack.c.l.b16 %v47
  %v132 = vunpack.c.l.b16 %v48
  %v133 = vunpack.c.l.b16 %v49
  %v134 = vunpack.c.l.b16 %v50
  %v135 = vunpack.c.l.b16 %v51
  %v136 = vunpack.c.l.b16 %v52
  %v137 = vpack.c.b16 %v106, %v105
  %v138 = vpack.c.b16 %v108, %v107
  %v139 = vpack.c.b16 %v110, %v109
  %v140 = vpack.c.b16 %v112, %v111
  %v141 = vpack.c.b16 %v114, %v113
  %v142 = vpack.c.b16 %v116, %v115
  %v143 = vpack.c.b16 %v118, %v117
  %v144 = vpack.c.b16 %v120, %v119
  %v145 = vpack.c.b16 %v122, %v121
  %v146 = vpack.c.b16 %v124, %v123
  %v147 = vpack.c.b16 %v126, %v125
  %v148 = vpack.c.b16 %v128, %v127
  %v149 = vpack.c.b16 %v130, %v129
  %v150 = vpack.c.b16 %v132, %v131
  %v151 = vpack.c.b16 %v134, %v133
  %v152 = vpack.c.b16 %v136, %v135
  %169 = vmatpush.bf16.msra.mxu0 %v144
  %170 = vmatpush.bf16.msra.mxu0 %v143
  %171 = vmatpush.bf16.msra.mxu0 %v142
  %172 = vmatpush.bf16.msra.mxu0 %v141
  %173 = vmatpush.bf16.msra.mxu0 %v140
  %174 = vmatpush.bf16.msra.mxu0 %v139
  %175 = vmatpush.bf16.msra.mxu0 %v138
  %176 = vmatpush.bf16.msra.mxu0 %v137
  %177 = vmatmul.bf16.gmra.mxu0 %v65
  %v178 = vpop.f32.mrf.mxu0
  %v179 = vadd.f32 0.0, %v178
  %v180 = vpop.f32.mrf.mxu0
  %v181 = vadd.f32 0.0, %v180
  %182 = vmatmul.bf16.gmra.mxu0 %v67
  %v183 = vpop.f32.mrf.mxu0
  %v184 = vadd.f32 0.0, %v183
  %v185 = vpop.f32.mrf.mxu0
  %v186 = vadd.f32 0.0, %v185
  %187 = vdwg.mxu0
  %188 = vmatpush.bf16.msra.mxu0 %v152
  %189 = vmatpush.bf16.msra.mxu0 %v151
  %190 = vmatpush.bf16.msra.mxu0 %v150
  %191 = vmatpush.bf16.msra.mxu0 %v149
  %192 = vmatpush.bf16.msra.mxu0 %v148
  %193 = vmatpush.bf16.msra.mxu0 %v147
  %194 = vmatpush.bf16.msra.mxu0 %v146
  %195 = vmatpush.bf16.msra.mxu0 %v145
  %196 = vmatmul.bf16.gmra.mxu0 %v66
  %v197 = vpop.f32.mrf.mxu0
  %v198 = vadd.f32 %v179, %v197
  %v199 = vpop.f32.mrf.mxu0
  %v200 = vadd.f32 %v181, %v199
  %201 = vmatmul.bf16.gmra.mxu0 %v68
  %v202 = vpop.f32.mrf.mxu0
  %v203 = vadd.f32 %v184, %v202
  %v204 = vpop.f32.mrf.mxu0
  %v205 = vadd.f32 %v186, %v204
  %206 = vdwg.mxu0
  %v207 = vld [vmem:[%s2] sm:$0x1]
  %v209 = vperm.slane %v207, 0
  %v211 = vmul.f32 %v198, %v209
  %v212 = vmul.f32 %v200, %v209
  %v213 = vmul.f32 %v203, %v209
  %v214 = vmul.f32 %v205, %v209
  %v215 = vld [vmem:[%s3] sm:$0x1]
  %v217 = vperm.slane %v215, 0
  %v219 = vadd.f32 %v211, %v217
  %v220 = vadd.f32 %v212, %v217
  %v221 = vadd.f32 %v213, %v217
  %v222 = vadd.f32 %v214, %v217
  %v223 = vmax.f32 %v219, 0.0
  %v224 = vmax.f32 %v220, 0.0
  %v225 = vmax.f32 %v221, 0.0
  %v226 = vmax.f32 %v222, 0.0
  %v227 = vpack.c.bf16 %v223, %v223
  %v228 = vpack.c.bf16 %v224, %v224
  %v229 = vpack.c.bf16 %v225, %v225
  %v230 = vpack.c.bf16 %v226, %v226
  %vm231 = vcmask 519168
  %232 = vst.msk [vmem:[%s4] sm:$0xf] %vm231, %v227
  %233 = vst.msk [vmem:[%s4 + $0x4] sm:$0xf] %vm231, %v228
  %234 = vst.msk [vmem:[%s4 + $0x8] sm:$0xf] %vm231, %v229
  %235 = vst.msk [vmem:[%s4 + $0xc] sm:$0xf] %vm231, %v230
  // Predicated region
  $region18: #{_lambda_.24} parent=0 // pred_check
    _
  $region19: #{_lambda_.24} parent=0 // pred_check_branch
    %237 = sbr.rel (0) target = $region21
  $region20: #{_lambda_.24} parent=0 // pred_region
    _
  $region21: #{_lambda_.24} parent=0 // pred_fallthru
    _
  // Predicated region
  $region22: #{_lambda_.24} parent=0 // pred_check
    _
  $region23: #{_lambda_.24} parent=0 // pred_check_branch
    %239 = sbr.rel (0) target = $region25
  $region24: #{_lambda_.24} parent=0 // pred_region
    _
  $region25: #{_lambda_.24} parent=0 // pred_fallthru
    _

</llo_original>
